<compile_context>
chip_gen: v7x
topology: tpu7x:2x2x1
jax: 0.10.0
libtpu: 0.0.40
codegen_flags: <defaults>
</compile_context>

<pallas_src>
import jax
import jax.numpy as jnp
from jax.experimental import pallas as pl
from jax.experimental.pallas import tpu as pltpu

IN_FEATURES = 3 * 40 * 40          # 4800
NUM_CLASSES = 10


def _mlp_kernel(x_ref, w1_ref, b1_ref, w2_ref, b2_ref, w3_ref, b3_ref, o_ref):
    x = x_ref[...]                                               # (TM, 4800) f32

    h1 = jnp.dot(x, w1_ref[...], preferred_element_type=jnp.float32) + b1_ref[...]
    h1 = jnp.tanh(h1)

    h2 = jnp.dot(h1, w2_ref[...], preferred_element_type=jnp.float32) + b2_ref[...]
    h2 = jnp.tanh(h2)

    logits = jnp.dot(h2, w3_ref[...], preferred_element_type=jnp.float32) + b3_ref[...]

    # Numerically stable log_softmax over the 10 classes (last axis).
    m = jnp.max(logits, axis=-1, keepdims=True)
    z = logits - m
    lse = jnp.log(jnp.sum(jnp.exp(z), axis=-1, keepdims=True))
    o_ref[...] = (z - lse).astype(o_ref.dtype)


def _choose_batch_tile(b_pad8, tm_max):
    """Largest tile (multiple of 8, <= tm_max) with minimal ragged-tail padding.

    The kernel is memory-bound on x, so padded rows are pure wasted HBM
    traffic; we prefer less padding, then the larger tile (better DMA
    efficiency / fewer per-step overheads), never shrinking below 1/4 of cap.
    """
    tm_cap = min(tm_max, b_pad8)
    floor = max(8, (tm_cap // 4) // 8 * 8)
    cands = range(tm_cap, floor - 1, -8)

    def padded_total(t):
        return -(-b_pad8 // t) * t

    return min(cands, key=lambda t: (padded_total(t), -t))


def three_layer_tanh_forward(x_nchw, params, *, tm_max=512):
    """x_nchw: (B, 3, 40, 40) float32. Returns (B, 10) f32 log-probabilities."""
    w1, b1, w2, b2, w3, b3 = params
    B = x_nchw.shape[0]
    hidden = w1.shape[1]

    # Flatten like torch.flatten(x, 1): row-major reshape, no data movement.
    x = x_nchw.reshape(B, IN_FEATURES)

    # Batch tiling: round up to a sublane multiple, pick a low-waste tile, pad
    # only the small tail (zero rows are harmless and sliced off at the end).
    b_pad8 = max(8, -(-B // 8) * 8)
    tm = _choose_batch_tile(b_pad8, tm_max)
    b_padded = -(-b_pad8 // tm) * tm
    if b_padded != B:
        x = jnp.pad(x, ((0, b_padded - B), (0, 0)))

    grid = (b_padded // tm,)

    def resident(shape):
        # Constant index_map -> block stays VMEM-resident across grid steps.
        # (For large hidden, add pipeline_mode=pl.Buffered(1) here to drop the
        # redundant second buffer; at hidden=32 it is ~0.6 MiB, negligible.)
        return pl.BlockSpec(shape, lambda *_: (0,) * len(shape))

    # VMEM budget from actual tiles (double-buffered x/out + resident params),
    # with 25% + 2 MiB headroom; capped well under v7x's 64 MiB physical VMEM.
    itemsize = 4
    vmem_bytes = 2 * tm * IN_FEATURES * itemsize            # x tile, 2 buffers
    vmem_bytes += 2 * tm * NUM_CLASSES * itemsize           # out tile, 2 buffers
    vmem_bytes += 2 * itemsize * ((IN_FEATURES + 1) * hidden
                                  + (hidden + 1) * hidden
                                  + (hidden + 1) * NUM_CLASSES)
    vmem_bytes = min(int(vmem_bytes * 1.25) + (2 << 20), 60 << 20)

    out = pl.pallas_call(
        _mlp_kernel,
        out_shape=jax.ShapeDtypeStruct((b_padded, NUM_CLASSES), jnp.float32),
        grid_spec=pl.GridSpec(
            grid=grid,
            in_specs=[
                # Streamed x tile: full-K block, f32, no wrapper-side copy.
                pl.BlockSpec((tm, IN_FEATURES), lambda i: (i, 0)),
                resident((IN_FEATURES, hidden)),                # w1
                resident((1, hidden)),                          # b1
                resident((hidden, hidden)),                     # w2
                resident((1, hidden)),                          # b2
                resident((hidden, NUM_CLASSES)),                # w3
                resident((1, NUM_CLASSES)),                     # b3
            ],
            out_specs=pl.BlockSpec((tm, NUM_CLASSES), lambda i: (i, 0)),
        ),
        compiler_params=pltpu.CompilerParams(
            # Batch tiles are independent -> megacore sharding on v7x.
            dimension_semantics=("parallel",),
            vmem_limit_bytes=vmem_bytes,
        ),
    )(x, w1, b1, w2, b2, w3, b3)

    return out[:B]


def reference_forward(x_nchw, params):
    """Pure-JAX f32 reference (matches the PyTorch module)."""
    w1, b1, w2, b2, w3, b3 = params
    x = x_nchw.reshape(x_nchw.shape[0], -1)
    h1 = jnp.tanh(x @ w1 + b1)
    h2 = jnp.tanh(h1 @ w2 + b2)
    logits = h2 @ w3 + b3
    return jax.nn.log_softmax(logits, axis=1)


def init_params(key, hidden_size):
    """Deterministic synthetic init. Weights stored as (in, out) = PyTorch W.T."""
    k1, k2, k3, k4, k5, k6 = jax.random.split(key, 6)

    def uniform_fan_in(k, shape, fan_in):
        bound = 1.0 / jnp.sqrt(fan_in)
        return jax.random.uniform(k, shape, jnp.float32, -bound, bound)

    w1 = uniform_fan_in(k1, (IN_FEATURES, hidden_size), IN_FEATURES)
    b1 = uniform_fan_in(k2, (1, hidden_size), IN_FEATURES)
    w2 = uniform_fan_in(k3, (hidden_size, hidden_size), hidden_size)
    b2 = uniform_fan_in(k4, (1, hidden_size), hidden_size)
    w3 = uniform_fan_in(k5, (hidden_size, NUM_CLASSES), hidden_size)
    b3 = uniform_fan_in(k6, (1, NUM_CLASSES), hidden_size)
    return (w1, b1, w2, b2, w3, b3)


if __name__ == "__main__":
    key = jax.random.PRNGKey(0)
    k_x, k_p = jax.random.split(key)

    batch = 2
    hidden_size = 32
    x = jax.random.normal(k_x, (batch, 3, 40, 40), dtype=jnp.float32)
    params = init_params(k_p, hidden_size)

    out = three_layer_tanh_forward(x, params)
    out = jax.block_until_ready(out)

    # Sanity: shape, valid log-probabilities, agreement with the f32 reference
    # (tolerance tightened vs. the old bf16-streaming version).
    assert out.shape == (batch, NUM_CLASSES)
    assert jnp.allclose(jnp.sum(jnp.exp(out), axis=1), 1.0, atol=1e-4)
    ref = reference_forward(x, params)
    assert jnp.allclose(out, ref, atol=2e-2), float(jnp.max(jnp.abs(out - ref)))

    print("KERNEL_OK")
</pallas_src>

<mosaic_0001>
module attributes {stable_mosaic.version = 11 : i64} {
  func.func @_mlp_kernel(%arg0: i32, %arg1: memref<8x4800xf32, #tpu.memory_space<vmem>>, %arg2: memref<4800x32xf32, #tpu.memory_space<vmem>>, %arg3: memref<1x32xf32, #tpu.memory_space<vmem>>, %arg4: memref<32x32xf32, #tpu.memory_space<vmem>>, %arg5: memref<1x32xf32, #tpu.memory_space<vmem>>, %arg6: memref<32x10xf32, #tpu.memory_space<vmem>>, %arg7: memref<1x10xf32, #tpu.memory_space<vmem>>, %arg8: memref<8x10xf32, #tpu.memory_space<vmem>>) attributes {dimension_semantics = [#tpu.dimension_semantics<parallel>], iteration_bounds = array<i64: 1>, scalar_prefetch = 0 : i64, scratch_operands = 0 : i64, tpu.core_type = #tpu.core_type<tc>, window_params = [{transform_indices = @transform_0, window_bounds = array<i64: 8, 4800>}, {pipeline_mode = #tpu.pipeline_mode<synchronous>, transform_indices = @transform_1, window_bounds = array<i64: 4800, 32>}, {pipeline_mode = #tpu.pipeline_mode<synchronous>, transform_indices = @transform_2, window_bounds = array<i64: 1, 32>}, {pipeline_mode = #tpu.pipeline_mode<synchronous>, transform_indices = @transform_3, window_bounds = array<i64: 32, 32>}, {pipeline_mode = #tpu.pipeline_mode<synchronous>, transform_indices = @transform_4, window_bounds = array<i64: 1, 32>}, {pipeline_mode = #tpu.pipeline_mode<synchronous>, transform_indices = @transform_5, window_bounds = array<i64: 32, 10>}, {pipeline_mode = #tpu.pipeline_mode<synchronous>, transform_indices = @transform_6, window_bounds = array<i64: 1, 10>}, {transform_indices = @transform_7, window_bounds = array<i64: 8, 10>}]} {
    %c0 = arith.constant 0 : index
    %c0_0 = arith.constant 0 : index
    %0 = vector.load %arg1[%c0, %c0_0] : memref<8x4800xf32, #tpu.memory_space<vmem>>, vector<8x4800xf32>
    %c0_1 = arith.constant 0 : index
    %c0_2 = arith.constant 0 : index
    %1 = vector.load %arg2[%c0_1, %c0_2] : memref<4800x32xf32, #tpu.memory_space<vmem>>, vector<4800x32xf32>
    %cst = arith.constant dense<0.000000e+00> : vector<8x32xf32>
    %2 = tpu.matmul %0, %1, %cst {dimension_numbers = #tpu.dot_dimension_numbers<[1], [0], [0], [1], [0, 0, 1, 1], [], []>} : vector<8x4800xf32>, vector<4800x32xf32>, vector<8x32xf32> -> vector<8x32xf32>
    %c0_3 = arith.constant 0 : index
    %c0_4 = arith.constant 0 : index
    %3 = vector.load %arg3[%c0_3, %c0_4] : memref<1x32xf32, #tpu.memory_space<vmem>>, vector<1x32xf32>
    %4 = vector.broadcast %3 : vector<1x32xf32> to vector<8x32xf32>
    %5 = arith.addf %2, %4 : vector<8x32xf32>
    %6 = math.tanh %5 : vector<8x32xf32>
    %c0_5 = arith.constant 0 : index
    %c0_6 = arith.constant 0 : index
    %7 = vector.load %arg4[%c0_5, %c0_6] : memref<32x32xf32, #tpu.memory_space<vmem>>, vector<32x32xf32>
    %cst_7 = arith.constant dense<0.000000e+00> : vector<8x32xf32>
    %8 = tpu.matmul %6, %7, %cst_7 {dimension_numbers = #tpu.dot_dimension_numbers<[1], [0], [0], [1], [0, 0, 1, 1], [], []>} : vector<8x32xf32>, vector<32x32xf32>, vector<8x32xf32> -> vector<8x32xf32>
    %c0_8 = arith.constant 0 : index
    %c0_9 = arith.constant 0 : index
    %9 = vector.load %arg5[%c0_8, %c0_9] : memref<1x32xf32, #tpu.memory_space<vmem>>, vector<1x32xf32>
    %10 = vector.broadcast %9 : vector<1x32xf32> to vector<8x32xf32>
    %11 = arith.addf %8, %10 : vector<8x32xf32>
    %12 = math.tanh %11 : vector<8x32xf32>
    %c0_10 = arith.constant 0 : index
    %c0_11 = arith.constant 0 : index
    %13 = vector.load %arg6[%c0_10, %c0_11] : memref<32x10xf32, #tpu.memory_space<vmem>>, vector<32x10xf32>
    %cst_12 = arith.constant dense<0.000000e+00> : vector<8x10xf32>
    %14 = tpu.matmul %12, %13, %cst_12 {dimension_numbers = #tpu.dot_dimension_numbers<[1], [0], [0], [1], [0, 0, 1, 1], [], []>} : vector<8x32xf32>, vector<32x10xf32>, vector<8x10xf32> -> vector<8x10xf32>
    %c0_13 = arith.constant 0 : index
    %c0_14 = arith.constant 0 : index
    %15 = vector.load %arg7[%c0_13, %c0_14] : memref<1x10xf32, #tpu.memory_space<vmem>>, vector<1x10xf32>
    %16 = vector.broadcast %15 : vector<1x10xf32> to vector<8x10xf32>
    %17 = arith.addf %14, %16 : vector<8x10xf32>
    %cst_15 = arith.constant dense<0xFF800000> : vector<8xf32>
    %18 = vector.multi_reduction <maximumf>, %17, %cst_15 [1] : vector<8x10xf32> to vector<8xf32>
    %19 = vector.shape_cast %18 : vector<8xf32> to vector<8x1xf32>
    %20 = vector.broadcast %19 : vector<8x1xf32> to vector<8x10xf32>
    %21 = arith.subf %17, %20 : vector<8x10xf32>
    %22 = math.exp %21 : vector<8x10xf32>
    %cst_16 = arith.constant dense<0.000000e+00> : vector<8xf32>
    %23 = vector.multi_reduction <add>, %22, %cst_16 [1] : vector<8x10xf32> to vector<8xf32>
    %24 = vector.shape_cast %23 : vector<8xf32> to vector<8x1xf32>
    %25 = math.log %24 : vector<8x1xf32>
    %26 = vector.broadcast %25 : vector<8x1xf32> to vector<8x10xf32>
    %27 = arith.subf %21, %26 : vector<8x10xf32>
    %c0_17 = arith.constant 0 : index
    %c0_18 = arith.constant 0 : index
    %28 = vector.load %arg8[%c0_17, %c0_18] : memref<8x10xf32, #tpu.memory_space<vmem>>, vector<8x10xf32>
    tpu.vector_store %arg8[%c0_17, %c0_18], %27 {strides = array<i32>} : memref<8x10xf32, #tpu.memory_space<vmem>>, vector<8x10xf32>,
    return
  }
  func.func @transform_0(%arg0: i32) -> (i32, i32) {
    %c0_i32 = arith.constant 0 : i32
    %c0_i32_0 = arith.constant 0 : i32
    return %arg0, %c0_i32 : i32, i32
  }
  func.func @transform_1(%arg0: i32) -> (i32, i32) {
    %c0_i32 = arith.constant 0 : i32
    %c0_i32_0 = arith.constant 0 : i32
    %c0_i32_1 = arith.constant 0 : i32
    return %c0_i32, %c0_i32_0 : i32, i32
  }
  func.func @transform_2(%arg0: i32) -> (i32, i32) {
    %c0_i32 = arith.constant 0 : i32
    %c0_i32_0 = arith.constant 0 : i32
    %c0_i32_1 = arith.constant 0 : i32
    return %c0_i32, %c0_i32_0 : i32, i32
  }
  func.func @transform_3(%arg0: i32) -> (i32, i32) {
    %c0_i32 = arith.constant 0 : i32
    %c0_i32_0 = arith.constant 0 : i32
    %c0_i32_1 = arith.constant 0 : i32
    return %c0_i32, %c0_i32_0 : i32, i32
  }
  func.func @transform_4(%arg0: i32) -> (i32, i32) {
    %c0_i32 = arith.constant 0 : i32
    %c0_i32_0 = arith.constant 0 : i32
    %c0_i32_1 = arith.constant 0 : i32
    return %c0_i32, %c0_i32_0 : i32, i32
  }
  func.func @transform_5(%arg0: i32) -> (i32, i32) {
    %c0_i32 = arith.constant 0 : i32
    %c0_i32_0 = arith.constant 0 : i32
    %c0_i32_1 = arith.constant 0 : i32
    return %c0_i32, %c0_i32_0 : i32, i32
  }
  func.func @transform_6(%arg0: i32) -> (i32, i32) {
    %c0_i32 = arith.constant 0 : i32
    %c0_i32_0 = arith.constant 0 : i32
    %c0_i32_1 = arith.constant 0 : i32
    return %c0_i32, %c0_i32_0 : i32, i32
  }
  func.func @transform_7(%arg0: i32) -> (i32, i32) {
    %c0_i32 = arith.constant 0 : i32
    %c0_i32_0 = arith.constant 0 : i32
    return %arg0, %c0_i32 : i32, i32
  }
}

</mosaic_0001>

<llo_original>
// kernel: tpu_custom_call.1
$region0: #{tpu_custom_call.1}
  #allocation0 [shape = 'u32[]', space=smem, size = 0x4, offset = 0x4, fixed_abs, tag = 'smem constant byte address 0x4 - core index']
  #allocation1 [shape = 'u32[144,128]{1,0:T(1,128)}', space=vmem, size = 0x12000, scoped, tag = 'internal scratch']
  %s0 = inlined_call_operand.vmem [shape: f32[8,4800], index: 0, kind: input, shape index: {}]
  %s1 = inlined_call_operand.vmem [shape: f32[4800,32], index: 1, kind: input, shape index: {}]
  %s2 = inlined_call_operand.vmem [shape: f32[1,32], index: 2, kind: input, shape index: {}]
  %s3 = inlined_call_operand.vmem [shape: f32[32,32], index: 3, kind: input, shape index: {}]
  %s4 = inlined_call_operand.vmem [shape: f32[1,32], index: 4, kind: input, shape index: {}]
  %s5 = inlined_call_operand.vmem [shape: f32[32,10], index: 5, kind: input, shape index: {}]
  %s6 = inlined_call_operand.vmem [shape: f32[1,10], index: 6, kind: input, shape index: {}]
  %s7 = inlined_call_operand.hbm [shape: f32[8,10], index: 7, kind: output, shape index: {}]
  %s8 = sld [smem:[#allocation0]]
  $region38: #{tpu_custom_call.1} parent=0
    _
  %s10 = ssub.s32 1, %s8
  %s11 = scalar_select 0, %s10, %s8
  $region1: #{tpu_custom_call.1} parent=0
    #allocation2 [shape = 'u8[4096]{0}', space=vmem, size = 0x1000, scoped, tag = 'output window, operand 0, single buffered']
    #allocation3 [shape = 's32[1]{0}', space=sflag, size = 0x4, scoped, tag = 'scoped memory for tpu_custom_call.1']
    %12 = vsyncpa [#allocation3], 0
    // Predicated region
    $region2: #{tpu_custom_call.1} parent=1 // pred_check
      _
    $region3: #{tpu_custom_call.1} parent=1 // pred_check_branch
      %14 = sbr.rel (0) target = $region5
    $region4: #{tpu_custom_call.1} parent=1 // pred_region
      _
    $region5: #{tpu_custom_call.1} parent=1 // pred_fallthru
      _
    // Predicated region
    $region6: #{tpu_custom_call.1} parent=1 // pred_check
      _
    $region7: #{tpu_custom_call.1} parent=1 // pred_check_branch
      %16 = sbr.rel (0) target = $region9
    $region8: #{tpu_custom_call.1} parent=1 // pred_region
      _
    $region9: #{tpu_custom_call.1} parent=1 // pred_fallthru
      _
    // Predicated region
    $region10: #{tpu_custom_call.1} parent=1 // pred_check
      _
    $region11: #{tpu_custom_call.1} parent=1 // pred_check_branch
      %18 = sbr.rel (0) target = $region13
    $region12: #{tpu_custom_call.1} parent=1 // pred_region
      _
    $region13: #{tpu_custom_call.1} parent=1 // pred_fallthru
      _
    // Predicated region
    $region14: #{tpu_custom_call.1} parent=1 // pred_check
      _
    $region15: #{tpu_custom_call.1} parent=1 // pred_check_branch
      %20 = sbr.rel (0) target = $region17
    $region16: #{tpu_custom_call.1} parent=1 // pred_region
      _
    $region17: #{tpu_custom_call.1} parent=1 // pred_fallthru
      _
    // Predicated region
    $region18: #{tpu_custom_call.1} parent=1 // pred_check
      _
    $region19: #{tpu_custom_call.1} parent=1 // pred_check_branch
      %22 = sbr.rel (0) target = $region21
    $region20: #{tpu_custom_call.1} parent=1 // pred_region
      _
    $region21: #{tpu_custom_call.1} parent=1 // pred_fallthru
      _
    // Predicated region
    $region22: #{tpu_custom_call.1} parent=1 // pred_check
      _
    $region23: #{tpu_custom_call.1} parent=1 // pred_check_branch
      %24 = sbr.rel (0) target = $region25
    $region24: #{tpu_custom_call.1} parent=1 // pred_region
      _
    $region25: #{tpu_custom_call.1} parent=1 // pred_fallthru
      _
    // Predicated region
    $region26: #{tpu_custom_call.1} parent=1 // pred_check
      _
    $region27: #{tpu_custom_call.1} parent=1 // pred_check_branch
      %26 = sbr.rel (0) target = $region29
    $region28: #{tpu_custom_call.1} parent=1 // pred_region
      _
    $region29: #{tpu_custom_call.1} parent=1 // pred_fallthru
      _
    %v27 = vld [vmem:[%s0] sm:$0xff]
    %v28 = vld [vmem:[%s0 + $0x8] sm:$0xff]
    %v29 = vld [vmem:[%s0 + $0x10] sm:$0xff]
    %v30 = vld [vmem:[%s0 + $0x18] sm:$0xff]
    %v31 = vld [vmem:[%s0 + $0x20] sm:$0xff]
    %v32 = vld [vmem:[%s0 + $0x28] sm:$0xff]
    %v33 = vld [vmem:[%s0 + $0x30] sm:$0xff]
    %v34 = vld [vmem:[%s0 + $0x38] sm:$0xff]
    %v35 = vld [vmem:[%s0 + $0x40] sm:$0xff]
    %v36 = vld [vmem:[%s0 + $0x48] sm:$0xff]
    %v37 = vld [vmem:[%s0 + $0x50] sm:$0xff]
    %v38 = vld [vmem:[%s0 + $0x58] sm:$0xff]
    %v39 = vld [vmem:[%s0 + $0x60] sm:$0xff]
    %v40 = vld [vmem:[%s0 + $0x68] sm:$0xff]
    %v41 = vld [vmem:[%s0 + $0x70] sm:$0xff]
    %v42 = vld [vmem:[%s0 + $0x78] sm:$0xff]
    %v43 = vld [vmem:[%s0 + $0x80] sm:$0xff]
    %v44 = vld [vmem:[%s0 + $0x88] sm:$0xff]
    %v45 = vld [vmem:[%s0 + $0x90] sm:$0xff]
    %v46 = vld [vmem:[%s0 + $0x98] sm:$0xff]
    %v47 = vld [vmem:[%s0 + $0xa0] sm:$0xff]
    %v48 = vld [vmem:[%s0 + $0xa8] sm:$0xff]
    %v49 = vld [vmem:[%s0 + $0xb0] sm:$0xff]
    %v50 = vld [vmem:[%s0 + $0xb8] sm:$0xff]
    %v51 = vld [vmem:[%s0 + $0xc0] sm:$0xff]
    %v52 = vld [vmem:[%s0 + $0xc8] sm:$0xff]
    %v53 = vld [vmem:[%s0 + $0xd0] sm:$0xff]
    %v54 = vld [vmem:[%s0 + $0xd8] sm:$0xff]
    %v55 = vld [vmem:[%s0 + $0xe0] sm:$0xff]
    %v56 = vld [vmem:[%s0 + $0xe8] sm:$0xff]
    %v57 = vld [vmem:[%s0 + $0xf0] sm:$0xff]
    %v58 = vld [vmem:[%s0 + $0xf8] sm:$0xff]
    %v59 = vld [vmem:[%s0 + $0x100] sm:$0xff]
    %v60 = vld [vmem:[%s0 + $0x108] sm:$0xff]
    %v61 = vld [vmem:[%s0 + $0x110] sm:$0xff]
    %v62 = vld [vmem:[%s0 + $0x118] sm:$0xff]
    %v63 = vld [vmem:[%s0 + $0x120] sm:$0xff]
    %v64 = vld [vmem:[%s0 + $0x128] sm:$0xff]
    %v65 = vld [vmem:[%s1] sm:$0xff]
    %v66 = vld [vmem:[%s1 + $0x8] sm:$0xff]
    %v67 = vld [vmem:[%s1 + $0x10] sm:$0xff]
    %v68 = vld [vmem:[%s1 + $0x18] sm:$0xff]
    %v69 = vld [vmem:[%s1 + $0x20] sm:$0xff]
    %v70 = vld [vmem:[%s1 + $0x28] sm:$0xff]
    %v71 = vld [vmem:[%s1 + $0x30] sm:$0xff]
    %v72 = vld [vmem:[%s1 + $0x38] sm:$0xff]
    %v73 = vld [vmem:[%s1 + $0x40] sm:$0xff]
    %v74 = vld [vmem:[%s1 + $0x48] sm:$0xff]
    %v75 = vld [vmem:[%s1 + $0x50] sm:$0xff]
    %v76 = vld [vmem:[%s1 + $0x58] sm:$0xff]
    %v77 = vld [vmem:[%s1 + $0x60] sm:$0xff]
    %v78 = vld [vmem:[%s1 + $0x68] sm:$0xff]
    %v79 = vld [vmem:[%s1 + $0x70] sm:$0xff]
    %v80 = vld [vmem:[%s1 + $0x78] sm:$0xff]
    %v81 = vld [vmem:[%s1 + $0x80] sm:$0xff]
    %v82 = vld [vmem:[%s1 + $0x88] sm:$0xff]
    %v83 = vld [vmem:[%s1 + $0x90] sm:$0xff]
    %v84 = vld [vmem:[%s1 + $0x98] sm:$0xff]
    %v85 = vld [vmem:[%s1 + $0xa0] sm:$0xff]
    %v86 = vld [vmem:[%s1 + $0xa8] sm:$0xff]
    %v87 = vld [vmem:[%s1 + $0xb0] sm:$0xff]
    %v88 = vld [vmem:[%s1 + $0xb8] sm:$0xff]
    %v89 = vld [vmem:[%s1 + $0xc0] sm:$0xff]
    %v90 = vld [vmem:[%s1 + $0xc8] sm:$0xff]
    %v91 = vld [vmem:[%s1 + $0xd0] sm:$0xff]
    %v92 = vld [vmem:[%s1 + $0xd8] sm:$0xff]
    %v93 = vld [vmem:[%s1 + $0xe0] sm:$0xff]
    %v94 = vld [vmem:[%s1 + $0xe8] sm:$0xff]
    %v95 = vld [vmem:[%s1 + $0xf0] sm:$0xff]
    %v96 = vld [vmem:[%s1 + $0xf8] sm:$0xff]
    %v97 = vld [vmem:[%s1 + $0x100] sm:$0xff]
    %v98 = vld [vmem:[%s1 + $0x108] sm:$0xff]
    %v99 = vld [vmem:[%s1 + $0x110] sm:$0xff]
    %v100 = vld [vmem:[%s1 + $0x118] sm:$0xff]
    %v101 = vld [vmem:[%s1 + $0x120] sm:$0xff]
    %v102 = vld [vmem:[%s1 + $0x128] sm:$0xff]
    %v103 = vld [vmem:[%s1 + $0x130] sm:$0xff]
    %v104 = vld [vmem:[%s1 + $0x138] sm:$0xff]
    %v105 = vld [vmem:[%s1 + $0x140] sm:$0xff]
    %v106 = vld [vmem:[%s1 + $0x148] sm:$0xff]
    %v107 = vld [vmem:[%s1 + $0x150] sm:$0xff]
    %v108 = vld [vmem:[%s1 + $0x158] sm:$0xff]
    %v109 = vld [vmem:[%s1 + $0x160] sm:$0xff]
    %v110 = vld [vmem:[%s1 + $0x168] sm:$0xff]
    %v111 = vld [vmem:[%s1 + $0x170] sm:$0xff]
    %v112 = vld [vmem:[%s1 + $0x178] sm:$0xff]
    %v113 = vld [vmem:[%s1 + $0x180] sm:$0xff]
    %v114 = vld [vmem:[%s1 + $0x188] sm:$0xff]
    %v115 = vld [vmem:[%s1 + $0x190] sm:$0xff]
    %v116 = vld [vmem:[%s1 + $0x198] sm:$0xff]
    %v117 = vld [vmem:[%s1 + $0x1a0] sm:$0xff]
    %v118 = vld [vmem:[%s1 + $0x1a8] sm:$0xff]
    %v119 = vld [vmem:[%s1 + $0x1b0] sm:$0xff]
    %v120 = vld [vmem:[%s1 + $0x1b8] sm:$0xff]
    %v121 = vld [vmem:[%s1 + $0x1c0] sm:$0xff]
    %v122 = vld [vmem:[%s1 + $0x1c8] sm:$0xff]
    %v123 = vld [vmem:[%s1 + $0x1d0] sm:$0xff]
    %v124 = vld [vmem:[%s1 + $0x1d8] sm:$0xff]
    %v125 = vld [vmem:[%s1 + $0x1e0] sm:$0xff]
    %v126 = vld [vmem:[%s1 + $0x1e8] sm:$0xff]
    %v127 = vld [vmem:[%s1 + $0x1f0] sm:$0xff]
    %v128 = vld [vmem:[%s1 + $0x1f8] sm:$0xff]
    %v129 = vld [vmem:[%s1 + $0x200] sm:$0xff]
    %v130 = vld [vmem:[%s1 + $0x208] sm:$0xff]
    %v131 = vld [vmem:[%s1 + $0x210] sm:$0xff]
    %v132 = vld [vmem:[%s1 + $0x218] sm:$0xff]
    %v133 = vld [vmem:[%s1 + $0x220] sm:$0xff]
    %v134 = vld [vmem:[%s1 + $0x228] sm:$0xff]
    %v135 = vld [vmem:[%s1 + $0x230] sm:$0xff]
    %v136 = vld [vmem:[%s1 + $0x238] sm:$0xff]
    %v137 = vld [vmem:[%s1 + $0x240] sm:$0xff]
    %v138 = vld [vmem:[%s1 + $0x248] sm:$0xff]
    %v139 = vld [vmem:[%s1 + $0x250] sm:$0xff]
    %v140 = vld [vmem:[%s1 + $0x258] sm:$0xff]
    %v141 = vld [vmem:[%s1 + $0x260] sm:$0xff]
    %v142 = vld [vmem:[%s1 + $0x268] sm:$0xff]
    %v143 = vld [vmem:[%s1 + $0x270] sm:$0xff]
    %v144 = vld [vmem:[%s1 + $0x278] sm:$0xff]
    %v145 = vld [vmem:[%s1 + $0x280] sm:$0xff]
    %v146 = vld [vmem:[%s1 + $0x288] sm:$0xff]
    %v147 = vld [vmem:[%s1 + $0x290] sm:$0xff]
    %v148 = vld [vmem:[%s1 + $0x298] sm:$0xff]
    %v149 = vld [vmem:[%s1 + $0x2a0] sm:$0xff]
    %v150 = vld [vmem:[%s1 + $0x2a8] sm:$0xff]
    %v151 = vld [vmem:[%s1 + $0x2b0] sm:$0xff]
    %v152 = vld [vmem:[%s1 + $0x2b8] sm:$0xff]
    %v153 = vld [vmem:[%s1 + $0x2c0] sm:$0xff]
    %v154 = vld [vmem:[%s1 + $0x2c8] sm:$0xff]
    %v155 = vld [vmem:[%s1 + $0x2d0] sm:$0xff]
    %v156 = vld [vmem:[%s1 + $0x2d8] sm:$0xff]
    %v157 = vld [vmem:[%s1 + $0x2e0] sm:$0xff]
    %v158 = vld [vmem:[%s1 + $0x2e8] sm:$0xff]
    %v159 = vld [vmem:[%s1 + $0x2f0] sm:$0xff]
    %v160 = vld [vmem:[%s1 + $0x2f8] sm:$0xff]
    %v161 = vld [vmem:[%s1 + $0x300] sm:$0xff]
    %v162 = vld [vmem:[%s1 + $0x308] sm:$0xff]
    %v163 = vld [vmem:[%s1 + $0x310] sm:$0xff]
    %v164 = vld [vmem:[%s1 + $0x318] sm:$0xff]
    %v165 = vld [vmem:[%s1 + $0x320] sm:$0xff]
    %v166 = vld [vmem:[%s1 + $0x328] sm:$0xff]
    %v167 = vld [vmem:[%s1 + $0x330] sm:$0xff]
    %v168 = vld [vmem:[%s1 + $0x338] sm:$0xff]
    %v169 = vld [vmem:[%s1 + $0x340] sm:$0xff]
    %v170 = vld [vmem:[%s1 + $0x348] sm:$0xff]
    %v171 = vld [vmem:[%s1 + $0x350] sm:$0xff]
    %v172 = vld [vmem:[%s1 + $0x358] sm:$0xff]
    %v173 = vld [vmem:[%s1 + $0x360] sm:$0xff]
    %v174 = vld [vmem:[%s1 + $0x368] sm:$0xff]
    %v175 = vld [vmem:[%s1 + $0x370] sm:$0xff]
    %v176 = vld [vmem:[%s1 + $0x378] sm:$0xff]
    %v177 = vld [vmem:[%s1 + $0x380] sm:$0xff]
    %v178 = vld [vmem:[%s1 + $0x388] sm:$0xff]
    %v179 = vld [vmem:[%s1 + $0x390] sm:$0xff]
    %v180 = vld [vmem:[%s1 + $0x398] sm:$0xff]
    %v181 = vld [vmem:[%s1 + $0x3a0] sm:$0xff]
    %v182 = vld [vmem:[%s1 + $0x3a8] sm:$0xff]
    %v183 = vld [vmem:[%s1 + $0x3b0] sm:$0xff]
    %v184 = vld [vmem:[%s1 + $0x3b8] sm:$0xff]
    %v185 = vld [vmem:[%s1 + $0x3c0] sm:$0xff]
    %v186 = vld [vmem:[%s1 + $0x3c8] sm:$0xff]
    %v187 = vld [vmem:[%s1 + $0x3d0] sm:$0xff]
    %v188 = vld [vmem:[%s1 + $0x3d8] sm:$0xff]
    %v189 = vld [vmem:[%s1 + $0x3e0] sm:$0xff]
    %v190 = vld [vmem:[%s1 + $0x3e8] sm:$0xff]
    %v191 = vld [vmem:[%s1 + $0x3f0] sm:$0xff]
    %v192 = vld [vmem:[%s1 + $0x3f8] sm:$0xff]
    %v193 = vld [vmem:[%s1 + $0x400] sm:$0xff]
    %v194 = vld [vmem:[%s1 + $0x408] sm:$0xff]
    %v195 = vld [vmem:[%s1 + $0x410] sm:$0xff]
    %v196 = vld [vmem:[%s1 + $0x418] sm:$0xff]
    %v197 = vld [vmem:[%s1 + $0x420] sm:$0xff]
    %v198 = vld [vmem:[%s1 + $0x428] sm:$0xff]
    %v199 = vld [vmem:[%s1 + $0x430] sm:$0xff]
    %v200 = vld [vmem:[%s1 + $0x438] sm:$0xff]
    %v201 = vld [vmem:[%s1 + $0x440] sm:$0xff]
    %v202 = vld [vmem:[%s1 + $0x448] sm:$0xff]
    %v203 = vld [vmem:[%s1 + $0x450] sm:$0xff]
    %v204 = vld [vmem:[%s1 + $0x458] sm:$0xff]
    %v205 = vld [vmem:[%s1 + $0x460] sm:$0xff]
    %v206 = vld [vmem:[%s1 + $0x468] sm:$0xff]
    %v207 = vld [vmem:[%s1 + $0x470] sm:$0xff]
    %v208 = vld [vmem:[%s1 + $0x478] sm:$0xff]
    %v209 = vld [vmem:[%s1 + $0x480] sm:$0xff]
    %v210 = vld [vmem:[%s1 + $0x488] sm:$0xff]
    %v211 = vld [vmem:[%s1 + $0x490] sm:$0xff]
    %v212 = vld [vmem:[%s1 + $0x498] sm:$0xff]
    %v213 = vld [vmem:[%s1 + $0x4a0] sm:$0xff]
    %v214 = vld [vmem:[%s1 + $0x4a8] sm:$0xff]
    %v215 = vld [vmem:[%s1 + $0x4b0] sm:$0xff]
    %v216 = vld [vmem:[%s1 + $0x4b8] sm:$0xff]
    %v217 = vld [vmem:[%s1 + $0x4c0] sm:$0xff]
    %v218 = vld [vmem:[%s1 + $0x4c8] sm:$0xff]
    %v219 = vld [vmem:[%s1 + $0x4d0] sm:$0xff]
    %v220 = vld [vmem:[%s1 + $0x4d8] sm:$0xff]
    %v221 = vld [vmem:[%s1 + $0x4e0] sm:$0xff]
    %v222 = vld [vmem:[%s1 + $0x4e8] sm:$0xff]
    %v223 = vld [vmem:[%s1 + $0x4f0] sm:$0xff]
    %v224 = vld [vmem:[%s1 + $0x4f8] sm:$0xff]
    %v225 = vld [vmem:[%s1 + $0x500] sm:$0xff]
    %v226 = vld [vmem:[%s1 + $0x508] sm:$0xff]
    %v227 = vld [vmem:[%s1 + $0x510] sm:$0xff]
    %v228 = vld [vmem:[%s1 + $0x518] sm:$0xff]
    %v229 = vld [vmem:[%s1 + $0x520] sm:$0xff]
    %v230 = vld [vmem:[%s1 + $0x528] sm:$0xff]
    %v231 = vld [vmem:[%s1 + $0x530] sm:$0xff]
    %v232 = vld [vmem:[%s1 + $0x538] sm:$0xff]
    %v233 = vld [vmem:[%s1 + $0x540] sm:$0xff]
    %v234 = vld [vmem:[%s1 + $0x548] sm:$0xff]
    %v235 = vld [vmem:[%s1 + $0x550] sm:$0xff]
    %v236 = vld [vmem:[%s1 + $0x558] sm:$0xff]
    %v237 = vld [vmem:[%s1 + $0x560] sm:$0xff]
    %v238 = vld [vmem:[%s1 + $0x568] sm:$0xff]
    %v239 = vld [vmem:[%s1 + $0x570] sm:$0xff]
    %v240 = vld [vmem:[%s1 + $0x578] sm:$0xff]
    %v241 = vld [vmem:[%s1 + $0x580] sm:$0xff]
    %v242 = vld [vmem:[%s1 + $0x588] sm:$0xff]
    %v243 = vld [vmem:[%s1 + $0x590] sm:$0xff]
    %v244 = vld [vmem:[%s1 + $0x598] sm:$0xff]
    %v245 = vld [vmem:[%s1 + $0x5a0] sm:$0xff]
    %v246 = vld [vmem:[%s1 + $0x5a8] sm:$0xff]
    %v247 = vld [vmem:[%s1 + $0x5b0] sm:$0xff]
    %v248 = vld [vmem:[%s1 + $0x5b8] sm:$0xff]
    %v249 = vld [vmem:[%s1 + $0x5c0] sm:$0xff]
    %v250 = vld [vmem:[%s1 + $0x5c8] sm:$0xff]
    %v251 = vld [vmem:[%s1 + $0x5d0] sm:$0xff]
    %v252 = vld [vmem:[%s1 + $0x5d8] sm:$0xff]
    %v253 = vld [vmem:[%s1 + $0x5e0] sm:$0xff]
    %v254 = vld [vmem:[%s1 + $0x5e8] sm:$0xff]
    %v255 = vld [vmem:[%s1 + $0x5f0] sm:$0xff]
    %v256 = vld [vmem:[%s1 + $0x5f8] sm:$0xff]
    %v257 = vld [vmem:[%s1 + $0x600] sm:$0xff]
    %v258 = vld [vmem:[%s1 + $0x608] sm:$0xff]
    %v259 = vld [vmem:[%s1 + $0x610] sm:$0xff]
    %v260 = vld [vmem:[%s1 + $0x618] sm:$0xff]
    %v261 = vld [vmem:[%s1 + $0x620] sm:$0xff]
    %v262 = vld [vmem:[%s1 + $0x628] sm:$0xff]
    %v263 = vld [vmem:[%s1 + $0x630] sm:$0xff]
    %v264 = vld [vmem:[%s1 + $0x638] sm:$0xff]
    %v265 = vld [vmem:[%s1 + $0x640] sm:$0xff]
    %v266 = vld [vmem:[%s1 + $0x648] sm:$0xff]
    %v267 = vld [vmem:[%s1 + $0x650] sm:$0xff]
    %v268 = vld [vmem:[%s1 + $0x658] sm:$0xff]
    %v269 = vld [vmem:[%s1 + $0x660] sm:$0xff]
    %v270 = vld [vmem:[%s1 + $0x668] sm:$0xff]
    %v271 = vld [vmem:[%s1 + $0x670] sm:$0xff]
    %v272 = vld [vmem:[%s1 + $0x678] sm:$0xff]
    %v273 = vld [vmem:[%s1 + $0x680] sm:$0xff]
    %v274 = vld [vmem:[%s1 + $0x688] sm:$0xff]
    %v275 = vld [vmem:[%s1 + $0x690] sm:$0xff]
    %v276 = vld [vmem:[%s1 + $0x698] sm:$0xff]
    %v277 = vld [vmem:[%s1 + $0x6a0] sm:$0xff]
    %v278 = vld [vmem:[%s1 + $0x6a8] sm:$0xff]
    %v279 = vld [vmem:[%s1 + $0x6b0] sm:$0xff]
    %v280 = vld [vmem:[%s1 + $0x6b8] sm:$0xff]
    %v281 = vld [vmem:[%s1 + $0x6c0] sm:$0xff]
    %v282 = vld [vmem:[%s1 + $0x6c8] sm:$0xff]
    %v283 = vld [vmem:[%s1 + $0x6d0] sm:$0xff]
    %v284 = vld [vmem:[%s1 + $0x6d8] sm:$0xff]
    %v285 = vld [vmem:[%s1 + $0x6e0] sm:$0xff]
    %v286 = vld [vmem:[%s1 + $0x6e8] sm:$0xff]
    %v287 = vld [vmem:[%s1 + $0x6f0] sm:$0xff]
    %v288 = vld [vmem:[%s1 + $0x6f8] sm:$0xff]
    %v289 = vld [vmem:[%s1 + $0x700] sm:$0xff]
    %v290 = vld [vmem:[%s1 + $0x708] sm:$0xff]
    %v291 = vld [vmem:[%s1 + $0x710] sm:$0xff]
    %v292 = vld [vmem:[%s1 + $0x718] sm:$0xff]
    %v293 = vld [vmem:[%s1 + $0x720] sm:$0xff]
    %v294 = vld [vmem:[%s1 + $0x728] sm:$0xff]
    %v295 = vld [vmem:[%s1 + $0x730] sm:$0xff]
    %v296 = vld [vmem:[%s1 + $0x738] sm:$0xff]
    %v297 = vld [vmem:[%s1 + $0x740] sm:$0xff]
    %v298 = vld [vmem:[%s1 + $0x748] sm:$0xff]
    %v299 = vld [vmem:[%s1 + $0x750] sm:$0xff]
    %v300 = vld [vmem:[%s1 + $0x758] sm:$0xff]
    %v301 = vld [vmem:[%s1 + $0x760] sm:$0xff]
    %v302 = vld [vmem:[%s1 + $0x768] sm:$0xff]
    %v303 = vld [vmem:[%s1 + $0x770] sm:$0xff]
    %v304 = vld [vmem:[%s1 + $0x778] sm:$0xff]
    %v305 = vld [vmem:[%s1 + $0x780] sm:$0xff]
    %v306 = vld [vmem:[%s1 + $0x788] sm:$0xff]
    %v307 = vld [vmem:[%s1 + $0x790] sm:$0xff]
    %v308 = vld [vmem:[%s1 + $0x798] sm:$0xff]
    %v309 = vld [vmem:[%s1 + $0x7a0] sm:$0xff]
    %v310 = vld [vmem:[%s1 + $0x7a8] sm:$0xff]
    %v311 = vld [vmem:[%s1 + $0x7b0] sm:$0xff]
    %v312 = vld [vmem:[%s1 + $0x7b8] sm:$0xff]
    %v313 = vld [vmem:[%s1 + $0x7c0] sm:$0xff]
    %v314 = vld [vmem:[%s1 + $0x7c8] sm:$0xff]
    %v315 = vld [vmem:[%s1 + $0x7d0] sm:$0xff]
    %v316 = vld [vmem:[%s1 + $0x7d8] sm:$0xff]
    %v317 = vld [vmem:[%s1 + $0x7e0] sm:$0xff]
    %v318 = vld [vmem:[%s1 + $0x7e8] sm:$0xff]
    %v319 = vld [vmem:[%s1 + $0x7f0] sm:$0xff]
    %v320 = vld [vmem:[%s1 + $0x7f8] sm:$0xff]
    %v321 = vld [vmem:[%s1 + $0x800] sm:$0xff]
    %v322 = vld [vmem:[%s1 + $0x808] sm:$0xff]
    %v323 = vld [vmem:[%s1 + $0x810] sm:$0xff]
    %v324 = vld [vmem:[%s1 + $0x818] sm:$0xff]
    %v325 = vld [vmem:[%s1 + $0x820] sm:$0xff]
    %v326 = vld [vmem:[%s1 + $0x828] sm:$0xff]
    %v327 = vld [vmem:[%s1 + $0x830] sm:$0xff]
    %v328 = vld [vmem:[%s1 + $0x838] sm:$0xff]
    %v329 = vld [vmem:[%s1 + $0x840] sm:$0xff]
    %v330 = vld [vmem:[%s1 + $0x848] sm:$0xff]
    %v331 = vld [vmem:[%s1 + $0x850] sm:$0xff]
    %v332 = vld [vmem:[%s1 + $0x858] sm:$0xff]
    %v333 = vld [vmem:[%s1 + $0x860] sm:$0xff]
    %v334 = vld [vmem:[%s1 + $0x868] sm:$0xff]
    %v335 = vld [vmem:[%s1 + $0x870] sm:$0xff]
    %v336 = vld [vmem:[%s1 + $0x878] sm:$0xff]
    %v337 = vld [vmem:[%s1 + $0x880] sm:$0xff]
    %v338 = vld [vmem:[%s1 + $0x888] sm:$0xff]
    %v339 = vld [vmem:[%s1 + $0x890] sm:$0xff]
    %v340 = vld [vmem:[%s1 + $0x898] sm:$0xff]
    %v341 = vld [vmem:[%s1 + $0x8a0] sm:$0xff]
    %v342 = vld [vmem:[%s1 + $0x8a8] sm:$0xff]
    %v343 = vld [vmem:[%s1 + $0x8b0] sm:$0xff]
    %v344 = vld [vmem:[%s1 + $0x8b8] sm:$0xff]
    %v345 = vld [vmem:[%s1 + $0x8c0] sm:$0xff]
    %v346 = vld [vmem:[%s1 + $0x8c8] sm:$0xff]
    %v347 = vld [vmem:[%s1 + $0x8d0] sm:$0xff]
    %v348 = vld [vmem:[%s1 + $0x8d8] sm:$0xff]
    %v349 = vld [vmem:[%s1 + $0x8e0] sm:$0xff]
    %v350 = vld [vmem:[%s1 + $0x8e8] sm:$0xff]
    %v351 = vld [vmem:[%s1 + $0x8f0] sm:$0xff]
    %v352 = vld [vmem:[%s1 + $0x8f8] sm:$0xff]
    %v353 = vld [vmem:[%s1 + $0x900] sm:$0xff]
    %v354 = vld [vmem:[%s1 + $0x908] sm:$0xff]
    %v355 = vld [vmem:[%s1 + $0x910] sm:$0xff]
    %v356 = vld [vmem:[%s1 + $0x918] sm:$0xff]
    %v357 = vld [vmem:[%s1 + $0x920] sm:$0xff]
    %v358 = vld [vmem:[%s1 + $0x928] sm:$0xff]
    %v359 = vld [vmem:[%s1 + $0x930] sm:$0xff]
    %v360 = vld [vmem:[%s1 + $0x938] sm:$0xff]
    %v361 = vld [vmem:[%s1 + $0x940] sm:$0xff]
    %v362 = vld [vmem:[%s1 + $0x948] sm:$0xff]
    %v363 = vld [vmem:[%s1 + $0x950] sm:$0xff]
    %v364 = vld [vmem:[%s1 + $0x958] sm:$0xff]
    %v365 = vld [vmem:[%s1 + $0x960] sm:$0xff]
    %v366 = vld [vmem:[%s1 + $0x968] sm:$0xff]
    %v367 = vld [vmem:[%s1 + $0x970] sm:$0xff]
    %v368 = vld [vmem:[%s1 + $0x978] sm:$0xff]
    %v369 = vld [vmem:[%s1 + $0x980] sm:$0xff]
    %v370 = vld [vmem:[%s1 + $0x988] sm:$0xff]
    %v371 = vld [vmem:[%s1 + $0x990] sm:$0xff]
    %v372 = vld [vmem:[%s1 + $0x998] sm:$0xff]
    %v373 = vld [vmem:[%s1 + $0x9a0] sm:$0xff]
    %v374 = vld [vmem:[%s1 + $0x9a8] sm:$0xff]
    %v375 = vld [vmem:[%s1 + $0x9b0] sm:$0xff]
    %v376 = vld [vmem:[%s1 + $0x9b8] sm:$0xff]
    %v377 = vld [vmem:[%s1 + $0x9c0] sm:$0xff]
    %v378 = vld [vmem:[%s1 + $0x9c8] sm:$0xff]
    %v379 = vld [vmem:[%s1 + $0x9d0] sm:$0xff]
    %v380 = vld [vmem:[%s1 + $0x9d8] sm:$0xff]
    %v381 = vld [vmem:[%s1 + $0x9e0] sm:$0xff]
    %v382 = vld [vmem:[%s1 + $0x9e8] sm:$0xff]
    %v383 = vld [vmem:[%s1 + $0x9f0] sm:$0xff]
    %v384 = vld [vmem:[%s1 + $0x9f8] sm:$0xff]
    %v385 = vld [vmem:[%s1 + $0xa00] sm:$0xff]
    %v386 = vld [vmem:[%s1 + $0xa08] sm:$0xff]
    %v387 = vld [vmem:[%s1 + $0xa10] sm:$0xff]
    %v388 = vld [vmem:[%s1 + $0xa18] sm:$0xff]
    %v389 = vld [vmem:[%s1 + $0xa20] sm:$0xff]
    %v390 = vld [vmem:[%s1 + $0xa28] sm:$0xff]
    %v391 = vld [vmem:[%s1 + $0xa30] sm:$0xff]
    %v392 = vld [vmem:[%s1 + $0xa38] sm:$0xff]
    %v393 = vld [vmem:[%s1 + $0xa40] sm:$0xff]
    %v394 = vld [vmem:[%s1 + $0xa48] sm:$0xff]
    %v395 = vld [vmem:[%s1 + $0xa50] sm:$0xff]
    %v396 = vld [vmem:[%s1 + $0xa58] sm:$0xff]
    %v397 = vld [vmem:[%s1 + $0xa60] sm:$0xff]
    %v398 = vld [vmem:[%s1 + $0xa68] sm:$0xff]
    %v399 = vld [vmem:[%s1 + $0xa70] sm:$0xff]
    %v400 = vld [vmem:[%s1 + $0xa78] sm:$0xff]
    %v401 = vld [vmem:[%s1 + $0xa80] sm:$0xff]
    %v402 = vld [vmem:[%s1 + $0xa88] sm:$0xff]
    %v403 = vld [vmem:[%s1 + $0xa90] sm:$0xff]
    %v404 = vld [vmem:[%s1 + $0xa98] sm:$0xff]
    %v405 = vld [vmem:[%s1 + $0xaa0] sm:$0xff]
    %v406 = vld [vmem:[%s1 + $0xaa8] sm:$0xff]
    %v407 = vld [vmem:[%s1 + $0xab0] sm:$0xff]
    %v408 = vld [vmem:[%s1 + $0xab8] sm:$0xff]
    %v409 = vld [vmem:[%s1 + $0xac0] sm:$0xff]
    %v410 = vld [vmem:[%s1 + $0xac8] sm:$0xff]
    %v411 = vld [vmem:[%s1 + $0xad0] sm:$0xff]
    %v412 = vld [vmem:[%s1 + $0xad8] sm:$0xff]
    %v413 = vld [vmem:[%s1 + $0xae0] sm:$0xff]
    %v414 = vld [vmem:[%s1 + $0xae8] sm:$0xff]
    %v415 = vld [vmem:[%s1 + $0xaf0] sm:$0xff]
    %v416 = vld [vmem:[%s1 + $0xaf8] sm:$0xff]
    %v417 = vld [vmem:[%s1 + $0xb00] sm:$0xff]
    %v418 = vld [vmem:[%s1 + $0xb08] sm:$0xff]
    %v419 = vld [vmem:[%s1 + $0xb10] sm:$0xff]
    %v420 = vld [vmem:[%s1 + $0xb18] sm:$0xff]
    %v421 = vld [vmem:[%s1 + $0xb20] sm:$0xff]
    %v422 = vld [vmem:[%s1 + $0xb28] sm:$0xff]
    %v423 = vld [vmem:[%s1 + $0xb30] sm:$0xff]
    %v424 = vld [vmem:[%s1 + $0xb38] sm:$0xff]
    %v425 = vld [vmem:[%s1 + $0xb40] sm:$0xff]
    %v426 = vld [vmem:[%s1 + $0xb48] sm:$0xff]
    %v427 = vld [vmem:[%s1 + $0xb50] sm:$0xff]
    %v428 = vld [vmem:[%s1 + $0xb58] sm:$0xff]
    %v429 = vld [vmem:[%s1 + $0xb60] sm:$0xff]
    %v430 = vld [vmem:[%s1 + $0xb68] sm:$0xff]
    %v431 = vld [vmem:[%s1 + $0xb70] sm:$0xff]
    %v432 = vld [vmem:[%s1 + $0xb78] sm:$0xff]
    %v433 = vld [vmem:[%s1 + $0xb80] sm:$0xff]
    %v434 = vld [vmem:[%s1 + $0xb88] sm:$0xff]
    %v435 = vld [vmem:[%s1 + $0xb90] sm:$0xff]
    %v436 = vld [vmem:[%s1 + $0xb98] sm:$0xff]
    %v437 = vld [vmem:[%s1 + $0xba0] sm:$0xff]
    %v438 = vld [vmem:[%s1 + $0xba8] sm:$0xff]
    %v439 = vld [vmem:[%s1 + $0xbb0] sm:$0xff]
    %v440 = vld [vmem:[%s1 + $0xbb8] sm:$0xff]
    %v441 = vld [vmem:[%s1 + $0xbc0] sm:$0xff]
    %v442 = vld [vmem:[%s1 + $0xbc8] sm:$0xff]
    %v443 = vld [vmem:[%s1 + $0xbd0] sm:$0xff]
    %v444 = vld [vmem:[%s1 + $0xbd8] sm:$0xff]
    %v445 = vld [vmem:[%s1 + $0xbe0] sm:$0xff]
    %v446 = vld [vmem:[%s1 + $0xbe8] sm:$0xff]
    %v447 = vld [vmem:[%s1 + $0xbf0] sm:$0xff]
    %v448 = vld [vmem:[%s1 + $0xbf8] sm:$0xff]
    %v449 = vld [vmem:[%s1 + $0xc00] sm:$0xff]
    %v450 = vld [vmem:[%s1 + $0xc08] sm:$0xff]
    %v451 = vld [vmem:[%s1 + $0xc10] sm:$0xff]
    %v452 = vld [vmem:[%s1 + $0xc18] sm:$0xff]
    %v453 = vld [vmem:[%s1 + $0xc20] sm:$0xff]
    %v454 = vld [vmem:[%s1 + $0xc28] sm:$0xff]
    %v455 = vld [vmem:[%s1 + $0xc30] sm:$0xff]
    %v456 = vld [vmem:[%s1 + $0xc38] sm:$0xff]
    %v457 = vld [vmem:[%s1 + $0xc40] sm:$0xff]
    %v458 = vld [vmem:[%s1 + $0xc48] sm:$0xff]
    %v459 = vld [vmem:[%s1 + $0xc50] sm:$0xff]
    %v460 = vld [vmem:[%s1 + $0xc58] sm:$0xff]
    %v461 = vld [vmem:[%s1 + $0xc60] sm:$0xff]
    %v462 = vld [vmem:[%s1 + $0xc68] sm:$0xff]
    %v463 = vld [vmem:[%s1 + $0xc70] sm:$0xff]
    %v464 = vld [vmem:[%s1 + $0xc78] sm:$0xff]
    %v465 = vld [vmem:[%s1 + $0xc80] sm:$0xff]
    %v466 = vld [vmem:[%s1 + $0xc88] sm:$0xff]
    %v467 = vld [vmem:[%s1 + $0xc90] sm:$0xff]
    %v468 = vld [vmem:[%s1 + $0xc98] sm:$0xff]
    %v469 = vld [vmem:[%s1 + $0xca0] sm:$0xff]
    %v470 = vld [vmem:[%s1 + $0xca8] sm:$0xff]
    %v471 = vld [vmem:[%s1 + $0xcb0] sm:$0xff]
    %v472 = vld [vmem:[%s1 + $0xcb8] sm:$0xff]
    %v473 = vld [vmem:[%s1 + $0xcc0] sm:$0xff]
    %v474 = vld [vmem:[%s1 + $0xcc8] sm:$0xff]
    %v475 = vld [vmem:[%s1 + $0xcd0] sm:$0xff]
    %v476 = vld [vmem:[%s1 + $0xcd8] sm:$0xff]
    %v477 = vld [vmem:[%s1 + $0xce0] sm:$0xff]
    %v478 = vld [vmem:[%s1 + $0xce8] sm:$0xff]
    %v479 = vld [vmem:[%s1 + $0xcf0] sm:$0xff]
    %v480 = vld [vmem:[%s1 + $0xcf8] sm:$0xff]
    %v481 = vld [vmem:[%s1 + $0xd00] sm:$0xff]
    %v482 = vld [vmem:[%s1 + $0xd08] sm:$0xff]
    %v483 = vld [vmem:[%s1 + $0xd10] sm:$0xff]
    %v484 = vld [vmem:[%s1 + $0xd18] sm:$0xff]
    %v485 = vld [vmem:[%s1 + $0xd20] sm:$0xff]
    %v486 = vld [vmem:[%s1 + $0xd28] sm:$0xff]
    %v487 = vld [vmem:[%s1 + $0xd30] sm:$0xff]
    %v488 = vld [vmem:[%s1 + $0xd38] sm:$0xff]
    %v489 = vld [vmem:[%s1 + $0xd40] sm:$0xff]
    %v490 = vld [vmem:[%s1 + $0xd48] sm:$0xff]
    %v491 = vld [vmem:[%s1 + $0xd50] sm:$0xff]
    %v492 = vld [vmem:[%s1 + $0xd58] sm:$0xff]
    %v493 = vld [vmem:[%s1 + $0xd60] sm:$0xff]
    %v494 = vld [vmem:[%s1 + $0xd68] sm:$0xff]
    %v495 = vld [vmem:[%s1 + $0xd70] sm:$0xff]
    %v496 = vld [vmem:[%s1 + $0xd78] sm:$0xff]
    %v497 = vld [vmem:[%s1 + $0xd80] sm:$0xff]
    %v498 = vld [vmem:[%s1 + $0xd88] sm:$0xff]
    %v499 = vld [vmem:[%s1 + $0xd90] sm:$0xff]
    %v500 = vld [vmem:[%s1 + $0xd98] sm:$0xff]
    %v501 = vld [vmem:[%s1 + $0xda0] sm:$0xff]
    %v502 = vld [vmem:[%s1 + $0xda8] sm:$0xff]
    %v503 = vld [vmem:[%s1 + $0xdb0] sm:$0xff]
    %v504 = vld [vmem:[%s1 + $0xdb8] sm:$0xff]
    %v505 = vld [vmem:[%s1 + $0xdc0] sm:$0xff]
    %v506 = vld [vmem:[%s1 + $0xdc8] sm:$0xff]
    %v507 = vld [vmem:[%s1 + $0xdd0] sm:$0xff]
    %v508 = vld [vmem:[%s1 + $0xdd8] sm:$0xff]
    %v509 = vld [vmem:[%s1 + $0xde0] sm:$0xff]
    %v510 = vld [vmem:[%s1 + $0xde8] sm:$0xff]
    %v511 = vld [vmem:[%s1 + $0xdf0] sm:$0xff]
    %v512 = vld [vmem:[%s1 + $0xdf8] sm:$0xff]
    %v513 = vld [vmem:[%s1 + $0xe00] sm:$0xff]
    %v514 = vld [vmem:[%s1 + $0xe08] sm:$0xff]
    %v515 = vld [vmem:[%s1 + $0xe10] sm:$0xff]
    %v516 = vld [vmem:[%s1 + $0xe18] sm:$0xff]
    %v517 = vld [vmem:[%s1 + $0xe20] sm:$0xff]
    %v518 = vld [vmem:[%s1 + $0xe28] sm:$0xff]
    %v519 = vld [vmem:[%s1 + $0xe30] sm:$0xff]
    %v520 = vld [vmem:[%s1 + $0xe38] sm:$0xff]
    %v521 = vld [vmem:[%s1 + $0xe40] sm:$0xff]
    %v522 = vld [vmem:[%s1 + $0xe48] sm:$0xff]
    %v523 = vld [vmem:[%s1 + $0xe50] sm:$0xff]
    %v524 = vld [vmem:[%s1 + $0xe58] sm:$0xff]
    %v525 = vld [vmem:[%s1 + $0xe60] sm:$0xff]
    %v526 = vld [vmem:[%s1 + $0xe68] sm:$0xff]
    %v527 = vld [vmem:[%s1 + $0xe70] sm:$0xff]
    %v528 = vld [vmem:[%s1 + $0xe78] sm:$0xff]
    %v529 = vld [vmem:[%s1 + $0xe80] sm:$0xff]
    %v530 = vld [vmem:[%s1 + $0xe88] sm:$0xff]
    %v531 = vld [vmem:[%s1 + $0xe90] sm:$0xff]
    %v532 = vld [vmem:[%s1 + $0xe98] sm:$0xff]
    %v533 = vld [vmem:[%s1 + $0xea0] sm:$0xff]
    %v534 = vld [vmem:[%s1 + $0xea8] sm:$0xff]
    %v535 = vld [vmem:[%s1 + $0xeb0] sm:$0xff]
    %v536 = vld [vmem:[%s1 + $0xeb8] sm:$0xff]
    %v537 = vld [vmem:[%s1 + $0xec0] sm:$0xff]
    %v538 = vld [vmem:[%s1 + $0xec8] sm:$0xff]
    %v539 = vld [vmem:[%s1 + $0xed0] sm:$0xff]
    %v540 = vld [vmem:[%s1 + $0xed8] sm:$0xff]
    %v541 = vld [vmem:[%s1 + $0xee0] sm:$0xff]
    %v542 = vld [vmem:[%s1 + $0xee8] sm:$0xff]
    %v543 = vld [vmem:[%s1 + $0xef0] sm:$0xff]
    %v544 = vld [vmem:[%s1 + $0xef8] sm:$0xff]
    %v545 = vld [vmem:[%s1 + $0xf00] sm:$0xff]
    %v546 = vld [vmem:[%s1 + $0xf08] sm:$0xff]
    %v547 = vld [vmem:[%s1 + $0xf10] sm:$0xff]
    %v548 = vld [vmem:[%s1 + $0xf18] sm:$0xff]
    %v549 = vld [vmem:[%s1 + $0xf20] sm:$0xff]
    %v550 = vld [vmem:[%s1 + $0xf28] sm:$0xff]
    %v551 = vld [vmem:[%s1 + $0xf30] sm:$0xff]
    %v552 = vld [vmem:[%s1 + $0xf38] sm:$0xff]
    %v553 = vld [vmem:[%s1 + $0xf40] sm:$0xff]
    %v554 = vld [vmem:[%s1 + $0xf48] sm:$0xff]
    %v555 = vld [vmem:[%s1 + $0xf50] sm:$0xff]
    %v556 = vld [vmem:[%s1 + $0xf58] sm:$0xff]
    %v557 = vld [vmem:[%s1 + $0xf60] sm:$0xff]
    %v558 = vld [vmem:[%s1 + $0xf68] sm:$0xff]
    %v559 = vld [vmem:[%s1 + $0xf70] sm:$0xff]
    %v560 = vld [vmem:[%s1 + $0xf78] sm:$0xff]
    %v561 = vld [vmem:[%s1 + $0xf80] sm:$0xff]
    %v562 = vld [vmem:[%s1 + $0xf88] sm:$0xff]
    %v563 = vld [vmem:[%s1 + $0xf90] sm:$0xff]
    %v564 = vld [vmem:[%s1 + $0xf98] sm:$0xff]
    %v565 = vld [vmem:[%s1 + $0xfa0] sm:$0xff]
    %v566 = vld [vmem:[%s1 + $0xfa8] sm:$0xff]
    %v567 = vld [vmem:[%s1 + $0xfb0] sm:$0xff]
    %v568 = vld [vmem:[%s1 + $0xfb8] sm:$0xff]
    %v569 = vld [vmem:[%s1 + $0xfc0] sm:$0xff]
    %v570 = vld [vmem:[%s1 + $0xfc8] sm:$0xff]
    %v571 = vld [vmem:[%s1 + $0xfd0] sm:$0xff]
    %v572 = vld [vmem:[%s1 + $0xfd8] sm:$0xff]
    %v573 = vld [vmem:[%s1 + $0xfe0] sm:$0xff]
    %v574 = vld [vmem:[%s1 + $0xfe8] sm:$0xff]
    %v575 = vld [vmem:[%s1 + $0xff0] sm:$0xff]
    %v576 = vld [vmem:[%s1 + $0xff8] sm:$0xff]
    %v577 = vld [vmem:[%s1 + $0x1000] sm:$0xff]
    %v578 = vld [vmem:[%s1 + $0x1008] sm:$0xff]
    %v579 = vld [vmem:[%s1 + $0x1010] sm:$0xff]
    %v580 = vld [vmem:[%s1 + $0x1018] sm:$0xff]
    %v581 = vld [vmem:[%s1 + $0x1020] sm:$0xff]
    %v582 = vld [vmem:[%s1 + $0x1028] sm:$0xff]
    %v583 = vld [vmem:[%s1 + $0x1030] sm:$0xff]
    %v584 = vld [vmem:[%s1 + $0x1038] sm:$0xff]
    %v585 = vld [vmem:[%s1 + $0x1040] sm:$0xff]
    %v586 = vld [vmem:[%s1 + $0x1048] sm:$0xff]
    %v587 = vld [vmem:[%s1 + $0x1050] sm:$0xff]
    %v588 = vld [vmem:[%s1 + $0x1058] sm:$0xff]
    %v589 = vld [vmem:[%s1 + $0x1060] sm:$0xff]
    %v590 = vld [vmem:[%s1 + $0x1068] sm:$0xff]
    %v591 = vld [vmem:[%s1 + $0x1070] sm:$0xff]
    %v592 = vld [vmem:[%s1 + $0x1078] sm:$0xff]
    %v593 = vld [vmem:[%s1 + $0x1080] sm:$0xff]
    %v594 = vld [vmem:[%s1 + $0x1088] sm:$0xff]
    %v595 = vld [vmem:[%s1 + $0x1090] sm:$0xff]
    %v596 = vld [vmem:[%s1 + $0x1098] sm:$0xff]
    %v597 = vld [vmem:[%s1 + $0x10a0] sm:$0xff]
    %v598 = vld [vmem:[%s1 + $0x10a8] sm:$0xff]
    %v599 = vld [vmem:[%s1 + $0x10b0] sm:$0xff]
    %v600 = vld [vmem:[%s1 + $0x10b8] sm:$0xff]
    %v601 = vld [vmem:[%s1 + $0x10c0] sm:$0xff]
    %v602 = vld [vmem:[%s1 + $0x10c8] sm:$0xff]
    %v603 = vld [vmem:[%s1 + $0x10d0] sm:$0xff]
    %v604 = vld [vmem:[%s1 + $0x10d8] sm:$0xff]
    %v605 = vld [vmem:[%s1 + $0x10e0] sm:$0xff]
    %v606 = vld [vmem:[%s1 + $0x10e8] sm:$0xff]
    %v607 = vld [vmem:[%s1 + $0x10f0] sm:$0xff]
    %v608 = vld [vmem:[%s1 + $0x10f8] sm:$0xff]
    %v609 = vld [vmem:[%s1 + $0x1100] sm:$0xff]
    %v610 = vld [vmem:[%s1 + $0x1108] sm:$0xff]
    %v611 = vld [vmem:[%s1 + $0x1110] sm:$0xff]
    %v612 = vld [vmem:[%s1 + $0x1118] sm:$0xff]
    %v613 = vld [vmem:[%s1 + $0x1120] sm:$0xff]
    %v614 = vld [vmem:[%s1 + $0x1128] sm:$0xff]
    %v615 = vld [vmem:[%s1 + $0x1130] sm:$0xff]
    %v616 = vld [vmem:[%s1 + $0x1138] sm:$0xff]
    %v617 = vld [vmem:[%s1 + $0x1140] sm:$0xff]
    %v618 = vld [vmem:[%s1 + $0x1148] sm:$0xff]
    %v619 = vld [vmem:[%s1 + $0x1150] sm:$0xff]
    %v620 = vld [vmem:[%s1 + $0x1158] sm:$0xff]
    %v621 = vld [vmem:[%s1 + $0x1160] sm:$0xff]
    %v622 = vld [vmem:[%s1 + $0x1168] sm:$0xff]
    %v623 = vld [vmem:[%s1 + $0x1170] sm:$0xff]
    %v624 = vld [vmem:[%s1 + $0x1178] sm:$0xff]
    %v625 = vld [vmem:[%s1 + $0x1180] sm:$0xff]
    %v626 = vld [vmem:[%s1 + $0x1188] sm:$0xff]
    %v627 = vld [vmem:[%s1 + $0x1190] sm:$0xff]
    %v628 = vld [vmem:[%s1 + $0x1198] sm:$0xff]
    %v629 = vld [vmem:[%s1 + $0x11a0] sm:$0xff]
    %v630 = vld [vmem:[%s1 + $0x11a8] sm:$0xff]
    %v631 = vld [vmem:[%s1 + $0x11b0] sm:$0xff]
    %v632 = vld [vmem:[%s1 + $0x11b8] sm:$0xff]
    %v633 = vld [vmem:[%s1 + $0x11c0] sm:$0xff]
    %v634 = vld [vmem:[%s1 + $0x11c8] sm:$0xff]
    %v635 = vld [vmem:[%s1 + $0x11d0] sm:$0xff]
    %v636 = vld [vmem:[%s1 + $0x11d8] sm:$0xff]
    %v637 = vld [vmem:[%s1 + $0x11e0] sm:$0xff]
    %v638 = vld [vmem:[%s1 + $0x11e8] sm:$0xff]
    %v639 = vld [vmem:[%s1 + $0x11f0] sm:$0xff]
    %v640 = vld [vmem:[%s1 + $0x11f8] sm:$0xff]
    %v641 = vld [vmem:[%s1 + $0x1200] sm:$0xff]
    %v642 = vld [vmem:[%s1 + $0x1208] sm:$0xff]
    %v643 = vld [vmem:[%s1 + $0x1210] sm:$0xff]
    %v644 = vld [vmem:[%s1 + $0x1218] sm:$0xff]
    %v645 = vld [vmem:[%s1 + $0x1220] sm:$0xff]
    %v646 = vld [vmem:[%s1 + $0x1228] sm:$0xff]
    %v647 = vld [vmem:[%s1 + $0x1230] sm:$0xff]
    %v648 = vld [vmem:[%s1 + $0x1238] sm:$0xff]
    %v649 = vld [vmem:[%s1 + $0x1240] sm:$0xff]
    %v650 = vld [vmem:[%s1 + $0x1248] sm:$0xff]
    %v651 = vld [vmem:[%s1 + $0x1250] sm:$0xff]
    %v652 = vld [vmem:[%s1 + $0x1258] sm:$0xff]
    %v653 = vld [vmem:[%s1 + $0x1260] sm:$0xff]
    %v654 = vld [vmem:[%s1 + $0x1268] sm:$0xff]
    %v655 = vld [vmem:[%s1 + $0x1270] sm:$0xff]
    %v656 = vld [vmem:[%s1 + $0x1278] sm:$0xff]
    %v657 = vld [vmem:[%s1 + $0x1280] sm:$0xff]
    %v658 = vld [vmem:[%s1 + $0x1288] sm:$0xff]
    %v659 = vld [vmem:[%s1 + $0x1290] sm:$0xff]
    %v660 = vld [vmem:[%s1 + $0x1298] sm:$0xff]
    %v661 = vld [vmem:[%s1 + $0x12a0] sm:$0xff]
    %v662 = vld [vmem:[%s1 + $0x12a8] sm:$0xff]
    %v663 = vld [vmem:[%s1 + $0x12b0] sm:$0xff]
    %v664 = vld [vmem:[%s1 + $0x12b8] sm:$0xff]
    %v665 = vld [vmem:[%s2] sm:$0x1]
    %v667 = vlaneseq
    %v668 = vshrl.u32 %v667, 7
    %v669 = vsub.s32 0, %v668
    %v670 = vrot.slane %v665, %v669
    %vm672 = vcmask 523264
    %v674 = vsel %vm672, %v64, 0
    %676 = vmatprep.subr.mxu0 0.0
    %677 = vmatpush1.msra.mxu0 %v65
    %678 = vmatprep.subr.mxu0 0.0
    %679 = vmatpush1.msra.mxu0 %v66
    %680 = vmatprep.subr.mxu0 0.0
    %681 = vmatpush1.msra.mxu0 %v67
    %682 = vmatprep.subr.mxu0 0.0
    %683 = vmatpush1.msra.mxu0 %v68
    %684 = vmatprep.subr.mxu0 0.0
    %685 = vmatpush1.msra.mxu0 %v69
    %686 = vmatprep.subr.mxu0 0.0
    %687 = vmatpush1.msra.mxu0 %v70
    %688 = vmatprep.subr.mxu0 0.0
    %689 = vmatpush1.msra.mxu0 %v71
    %690 = vmatprep.subr.mxu0 0.0
    %691 = vmatpush1.msra.mxu0 %v72
    %692 = vmatprep.subr.mxu0 0.0
    %693 = vmatpush1.msra.mxu0 %v73
    %694 = vmatprep.subr.mxu0 0.0
    %695 = vmatpush1.msra.mxu0 %v74
    %696 = vmatprep.subr.mxu0 0.0
    %697 = vmatpush1.msra.mxu0 %v75
    %698 = vmatprep.subr.mxu0 0.0
    %699 = vmatpush1.msra.mxu0 %v76
    %700 = vmatprep.subr.mxu0 0.0
    %701 = vmatpush1.msra.mxu0 %v77
    %702 = vmatprep.subr.mxu0 0.0
    %703 = vmatpush1.msra.mxu0 %v78
    %704 = vmatprep.subr.mxu0 0.0
    %705 = vmatpush1.msra.mxu0 %v79
    %706 = vmatprep.subr.mxu0 0.0
    %707 = vmatpush1.msra.mxu0 %v80
    %708 = vmatprep.subr.mxu0 0.0
    %709 = vmatpush1.msra.mxu0 %v81
    %710 = vmatprep.subr.mxu0 0.0
    %711 = vmatpush1.msra.mxu0 %v82
    %712 = vmatprep.subr.mxu0 0.0
    %713 = vmatpush1.msra.mxu0 %v83
    %714 = vmatprep.subr.mxu0 0.0
    %715 = vmatpush1.msra.mxu0 %v84
    %716 = vmatprep.subr.mxu0 0.0
    %717 = vmatpush1.msra.mxu0 %v85
    %718 = vmatprep.subr.mxu0 0.0
    %719 = vmatpush1.msra.mxu0 %v86
    %720 = vmatprep.subr.mxu0 0.0
    %721 = vmatpush1.msra.mxu0 %v87
    %722 = vmatprep.subr.mxu0 0.0
    %723 = vmatpush1.msra.mxu0 %v88
    %724 = vmatprep.subr.mxu0 0.0
    %725 = vmatpush1.msra.mxu0 %v89
    %726 = vmatprep.subr.mxu0 0.0
    %727 = vmatpush1.msra.mxu0 %v90
    %728 = vmatprep.subr.mxu0 0.0
    %729 = vmatpush1.msra.mxu0 %v91
    %730 = vmatprep.subr.mxu0 0.0
    %731 = vmatpush1.msra.mxu0 %v92
    %732 = vmatprep.subr.mxu0 0.0
    %733 = vmatpush1.msra.mxu0 %v93
    %734 = vmatprep.subr.mxu0 0.0
    %735 = vmatpush1.msra.mxu0 %v94
    %736 = vmatprep.subr.mxu0 0.0
    %737 = vmatpush1.msra.mxu0 %v95
    %738 = vmatprep.subr.mxu0 0.0
    %739 = vmatpush1.msra.mxu0 %v96
    %740 = vmatprep.mubr.f32.mxu0 %v28
    %741 = vmatmul.mubr.f32.gmra.mrb[0].mxu0 %v27
    %v742 = vpop.f32.mrb[0].mxu0
    %v743 = vadd.f32 %v670, %v742
    %v744 = vpop.f32.mrb[0].mxu0
    %745 = vdwg.mxu0
    %746 = vmatprep.subr.mxu0 0.0
    %747 = vmatpush1.msra.mxu0 %v97
    %748 = vmatprep.subr.mxu0 0.0
    %749 = vmatpush1.msra.mxu0 %v98
    %750 = vmatprep.subr.mxu0 0.0
    %751 = vmatpush1.msra.mxu0 %v99
    %752 = vmatprep.subr.mxu0 0.0
    %753 = vmatpush1.msra.mxu0 %v100
    %754 = vmatprep.subr.mxu0 0.0
    %755 = vmatpush1.msra.mxu0 %v101
    %756 = vmatprep.subr.mxu0 0.0
    %757 = vmatpush1.msra.mxu0 %v102
    %758 = vmatprep.subr.mxu0 0.0
    %759 = vmatpush1.msra.mxu0 %v103
    %760 = vmatprep.subr.mxu0 0.0
    %761 = vmatpush1.msra.mxu0 %v104
    %762 = vmatprep.subr.mxu0 0.0
    %763 = vmatpush1.msra.mxu0 %v105
    %764 = vmatprep.subr.mxu0 0.0
    %765 = vmatpush1.msra.mxu0 %v106
    %766 = vmatprep.subr.mxu0 0.0
    %767 = vmatpush1.msra.mxu0 %v107
    %768 = vmatprep.subr.mxu0 0.0
    %769 = vmatpush1.msra.mxu0 %v108
    %770 = vmatprep.subr.mxu0 0.0
    %771 = vmatpush1.msra.mxu0 %v109
    %772 = vmatprep.subr.mxu0 0.0
    %773 = vmatpush1.msra.mxu0 %v110
    %774 = vmatprep.subr.mxu0 0.0
    %775 = vmatpush1.msra.mxu0 %v111
    %776 = vmatprep.subr.mxu0 0.0
    %777 = vmatpush1.msra.mxu0 %v112
    %778 = vmatprep.subr.mxu0 0.0
    %779 = vmatpush1.msra.mxu0 %v113
    %780 = vmatprep.subr.mxu0 0.0
    %781 = vmatpush1.msra.mxu0 %v114
    %782 = vmatprep.subr.mxu0 0.0
    %783 = vmatpush1.msra.mxu0 %v115
    %784 = vmatprep.subr.mxu0 0.0
    %785 = vmatpush1.msra.mxu0 %v116
    %786 = vmatprep.subr.mxu0 0.0
    %787 = vmatpush1.msra.mxu0 %v117
    %788 = vmatprep.subr.mxu0 0.0
    %789 = vmatpush1.msra.mxu0 %v118
    %790 = vmatprep.subr.mxu0 0.0
    %791 = vmatpush1.msra.mxu0 %v119
    %792 = vmatprep.subr.mxu0 0.0
    %793 = vmatpush1.msra.mxu0 %v120
    %794 = vmatprep.subr.mxu0 0.0
    %795 = vmatpush1.msra.mxu0 %v121
    %796 = vmatprep.subr.mxu0 0.0
    %797 = vmatpush1.msra.mxu0 %v122
    %798 = vmatprep.subr.mxu0 0.0
    %799 = vmatpush1.msra.mxu0 %v123
    %800 = vmatprep.subr.mxu0 0.0
    %801 = vmatpush1.msra.mxu0 %v124
    %802 = vmatprep.subr.mxu0 0.0
    %803 = vmatpush1.msra.mxu0 %v125
    %804 = vmatprep.subr.mxu0 0.0
    %805 = vmatpush1.msra.mxu0 %v126
    %806 = vmatprep.subr.mxu0 0.0
    %807 = vmatpush1.msra.mxu0 %v127
    %808 = vmatprep.subr.mxu0 0.0
    %809 = vmatpush1.msra.mxu0 %v128
    %810 = vmatprep.mubr.f32.mxu0 %v30
    %811 = vmatmul.mubr.f32.gmra.mrb[0].mxu0 %v29
    %v812 = vpop.f32.mrb[0].mxu0
    %v813 = vadd.f32 %v743, %v812
    %v814 = vpop.f32.mrb[0].mxu0
    %815 = vdwg.mxu0
    %816 = vmatprep.subr.mxu0 0.0
    %817 = vmatpush1.msra.mxu0 %v129
    %818 = vmatprep.subr.mxu0 0.0
    %819 = vmatpush1.msra.mxu0 %v130
    %820 = vmatprep.subr.mxu0 0.0
    %821 = vmatpush1.msra.mxu0 %v131
    %822 = vmatprep.subr.mxu0 0.0
    %823 = vmatpush1.msra.mxu0 %v132
    %824 = vmatprep.subr.mxu0 0.0
    %825 = vmatpush1.msra.mxu0 %v133
    %826 = vmatprep.subr.mxu0 0.0
    %827 = vmatpush1.msra.mxu0 %v134
    %828 = vmatprep.subr.mxu0 0.0
    %829 = vmatpush1.msra.mxu0 %v135
    %830 = vmatprep.subr.mxu0 0.0
    %831 = vmatpush1.msra.mxu0 %v136
    %832 = vmatprep.subr.mxu0 0.0
    %833 = vmatpush1.msra.mxu0 %v137
    %834 = vmatprep.subr.mxu0 0.0
    %835 = vmatpush1.msra.mxu0 %v138
    %836 = vmatprep.subr.mxu0 0.0
    %837 = vmatpush1.msra.mxu0 %v139
    %838 = vmatprep.subr.mxu0 0.0
    %839 = vmatpush1.msra.mxu0 %v140
    %840 = vmatprep.subr.mxu0 0.0
    %841 = vmatpush1.msra.mxu0 %v141
    %842 = vmatprep.subr.mxu0 0.0
    %843 = vmatpush1.msra.mxu0 %v142
    %844 = vmatprep.subr.mxu0 0.0
    %845 = vmatpush1.msra.mxu0 %v143
    %846 = vmatprep.subr.mxu0 0.0
    %847 = vmatpush1.msra.mxu0 %v144
    %848 = vmatprep.subr.mxu0 0.0
    %849 = vmatpush1.msra.mxu0 %v145
    %850 = vmatprep.subr.mxu0 0.0
    %851 = vmatpush1.msra.mxu0 %v146
    %852 = vmatprep.subr.mxu0 0.0
    %853 = vmatpush1.msra.mxu0 %v147
    %854 = vmatprep.subr.mxu0 0.0
    %855 = vmatpush1.msra.mxu0 %v148
    %856 = vmatprep.subr.mxu0 0.0
    %857 = vmatpush1.msra.mxu0 %v149
    %858 = vmatprep.subr.mxu0 0.0
    %859 = vmatpush1.msra.mxu0 %v150
    %860 = vmatprep.subr.mxu0 0.0
    %861 = vmatpush1.msra.mxu0 %v151
    %862 = vmatprep.subr.mxu0 0.0
    %863 = vmatpush1.msra.mxu0 %v152
    %864 = vmatprep.subr.mxu0 0.0
    %865 = vmatpush1.msra.mxu0 %v153
    %866 = vmatprep.subr.mxu0 0.0
    %867 = vmatpush1.msra.mxu0 %v154
    %868 = vmatprep.subr.mxu0 0.0
    %869 = vmatpush1.msra.mxu0 %v155
    %870 = vmatprep.subr.mxu0 0.0
    %871 = vmatpush1.msra.mxu0 %v156
    %872 = vmatprep.subr.mxu0 0.0
    %873 = vmatpush1.msra.mxu0 %v157
    %874 = vmatprep.subr.mxu0 0.0
    %875 = vmatpush1.msra.mxu0 %v158
    %876 = vmatprep.subr.mxu0 0.0
    %877 = vmatpush1.msra.mxu0 %v159
    %878 = vmatprep.subr.mxu0 0.0
    %879 = vmatpush1.msra.mxu0 %v160
    %880 = vmatprep.mubr.f32.mxu0 %v32
    %881 = vmatmul.mubr.f32.gmra.mrb[0].mxu0 %v31
    %v882 = vpop.f32.mrb[0].mxu0
    %v883 = vadd.f32 %v813, %v882
    %v884 = vpop.f32.mrb[0].mxu0
    %885 = vdwg.mxu0
    %886 = vmatprep.subr.mxu0 0.0
    %887 = vmatpush1.msra.mxu0 %v161
    %888 = vmatprep.subr.mxu0 0.0
    %889 = vmatpush1.msra.mxu0 %v162
    %890 = vmatprep.subr.mxu0 0.0
    %891 = vmatpush1.msra.mxu0 %v163
    %892 = vmatprep.subr.mxu0 0.0
    %893 = vmatpush1.msra.mxu0 %v164
    %894 = vmatprep.subr.mxu0 0.0
    %895 = vmatpush1.msra.mxu0 %v165
    %896 = vmatprep.subr.mxu0 0.0
    %897 = vmatpush1.msra.mxu0 %v166
    %898 = vmatprep.subr.mxu0 0.0
    %899 = vmatpush1.msra.mxu0 %v167
    %900 = vmatprep.subr.mxu0 0.0
    %901 = vmatpush1.msra.mxu0 %v168
    %902 = vmatprep.subr.mxu0 0.0
    %903 = vmatpush1.msra.mxu0 %v169
    %904 = vmatprep.subr.mxu0 0.0
    %905 = vmatpush1.msra.mxu0 %v170
    %906 = vmatprep.subr.mxu0 0.0
    %907 = vmatpush1.msra.mxu0 %v171
    %908 = vmatprep.subr.mxu0 0.0
    %909 = vmatpush1.msra.mxu0 %v172
    %910 = vmatprep.subr.mxu0 0.0
    %911 = vmatpush1.msra.mxu0 %v173
    %912 = vmatprep.subr.mxu0 0.0
    %913 = vmatpush1.msra.mxu0 %v174
    %914 = vmatprep.subr.mxu0 0.0
    %915 = vmatpush1.msra.mxu0 %v175
    %916 = vmatprep.subr.mxu0 0.0
    %917 = vmatpush1.msra.mxu0 %v176
    %918 = vmatprep.subr.mxu0 0.0
    %919 = vmatpush1.msra.mxu0 %v177
    %920 = vmatprep.subr.mxu0 0.0
    %921 = vmatpush1.msra.mxu0 %v178
    %922 = vmatprep.subr.mxu0 0.0
    %923 = vmatpush1.msra.mxu0 %v179
    %924 = vmatprep.subr.mxu0 0.0
    %925 = vmatpush1.msra.mxu0 %v180
    %926 = vmatprep.subr.mxu0 0.0
    %927 = vmatpush1.msra.mxu0 %v181
    %928 = vmatprep.subr.mxu0 0.0
    %929 = vmatpush1.msra.mxu0 %v182
    %930 = vmatprep.subr.mxu0 0.0
    %931 = vmatpush1.msra.mxu0 %v183
    %932 = vmatprep.subr.mxu0 0.0
    %933 = vmatpush1.msra.mxu0 %v184
    %934 = vmatprep.subr.mxu0 0.0
    %935 = vmatpush1.msra.mxu0 %v185
    %936 = vmatprep.subr.mxu0 0.0
    %937 = vmatpush1.msra.mxu0 %v186
    %938 = vmatprep.subr.mxu0 0.0
    %939 = vmatpush1.msra.mxu0 %v187
    %940 = vmatprep.subr.mxu0 0.0
    %941 = vmatpush1.msra.mxu0 %v188
    %942 = vmatprep.subr.mxu0 0.0
    %943 = vmatpush1.msra.mxu0 %v189
    %944 = vmatprep.subr.mxu0 0.0
    %945 = vmatpush1.msra.mxu0 %v190
    %946 = vmatprep.subr.mxu0 0.0
    %947 = vmatpush1.msra.mxu0 %v191
    %948 = vmatprep.subr.mxu0 0.0
    %949 = vmatpush1.msra.mxu0 %v192
    %950 = vmatprep.mubr.f32.mxu0 %v34
    %951 = vmatmul.mubr.f32.gmra.mrb[0].mxu0 %v33
    %v952 = vpop.f32.mrb[0].mxu0
    %v953 = vadd.f32 %v883, %v952
    %v954 = vpop.f32.mrb[0].mxu0
    %955 = vdwg.mxu0
    %956 = vmatprep.subr.mxu0 0.0
    %957 = vmatpush1.msra.mxu0 %v193
    %958 = vmatprep.subr.mxu0 0.0
    %959 = vmatpush1.msra.mxu0 %v194
    %960 = vmatprep.subr.mxu0 0.0
    %961 = vmatpush1.msra.mxu0 %v195
    %962 = vmatprep.subr.mxu0 0.0
    %963 = vmatpush1.msra.mxu0 %v196
    %964 = vmatprep.subr.mxu0 0.0
    %965 = vmatpush1.msra.mxu0 %v197
    %966 = vmatprep.subr.mxu0 0.0
    %967 = vmatpush1.msra.mxu0 %v198
    %968 = vmatprep.subr.mxu0 0.0
    %969 = vmatpush1.msra.mxu0 %v199
    %970 = vmatprep.subr.mxu0 0.0
    %971 = vmatpush1.msra.mxu0 %v200
    %972 = vmatprep.subr.mxu0 0.0
    %973 = vmatpush1.msra.mxu0 %v201
    %974 = vmatprep.subr.mxu0 0.0
    %975 = vmatpush1.msra.mxu0 %v202
    %976 = vmatprep.subr.mxu0 0.0
    %977 = vmatpush1.msra.mxu0 %v203
    %978 = vmatprep.subr.mxu0 0.0
    %979 = vmatpush1.msra.mxu0 %v204
    %980 = vmatprep.subr.mxu0 0.0
    %981 = vmatpush1.msra.mxu0 %v205
    %982 = vmatprep.subr.mxu0 0.0
    %983 = vmatpush1.msra.mxu0 %v206
    %984 = vmatprep.subr.mxu0 0.0
    %985 = vmatpush1.msra.mxu0 %v207
    %986 = vmatprep.subr.mxu0 0.0
    %987 = vmatpush1.msra.mxu0 %v208
    %988 = vmatprep.subr.mxu0 0.0
    %989 = vmatpush1.msra.mxu0 %v209
    %990 = vmatprep.subr.mxu0 0.0
    %991 = vmatpush1.msra.mxu0 %v210
    %992 = vmatprep.subr.mxu0 0.0
    %993 = vmatpush1.msra.mxu0 %v211
    %994 = vmatprep.subr.mxu0 0.0
    %995 = vmatpush1.msra.mxu0 %v212
    %996 = vmatprep.subr.mxu0 0.0
    %997 = vmatpush1.msra.mxu0 %v213
    %998 = vmatprep.subr.mxu0 0.0
    %999 = vmatpush1.msra.mxu0 %v214
    %1000 = vmatprep.subr.mxu0 0.0
    %1001 = vmatpush1.msra.mxu0 %v215
    %1002 = vmatprep.subr.mxu0 0.0
    %1003 = vmatpush1.msra.mxu0 %v216
    %1004 = vmatprep.subr.mxu0 0.0
    %1005 = vmatpush1.msra.mxu0 %v217
    %1006 = vmatprep.subr.mxu0 0.0
    %1007 = vmatpush1.msra.mxu0 %v218
    %1008 = vmatprep.subr.mxu0 0.0
    %1009 = vmatpush1.msra.mxu0 %v219
    %1010 = vmatprep.subr.mxu0 0.0
    %1011 = vmatpush1.msra.mxu0 %v220
    %1012 = vmatprep.subr.mxu0 0.0
    %1013 = vmatpush1.msra.mxu0 %v221
    %1014 = vmatprep.subr.mxu0 0.0
    %1015 = vmatpush1.msra.mxu0 %v222
    %1016 = vmatprep.subr.mxu0 0.0
    %1017 = vmatpush1.msra.mxu0 %v223
    %1018 = vmatprep.subr.mxu0 0.0
    %1019 = vmatpush1.msra.mxu0 %v224
    %1020 = vmatprep.mubr.f32.mxu0 %v36
    %1021 = vmatmul.mubr.f32.gmra.mrb[0].mxu0 %v35
    %v1022 = vpop.f32.mrb[0].mxu0
    %v1023 = vadd.f32 %v953, %v1022
    %v1024 = vpop.f32.mrb[0].mxu0
    %1025 = vdwg.mxu0
    %1026 = vmatprep.subr.mxu0 0.0
    %1027 = vmatpush1.msra.mxu0 %v225
    %1028 = vmatprep.subr.mxu0 0.0
    %1029 = vmatpush1.msra.mxu0 %v226
    %1030 = vmatprep.subr.mxu0 0.0
    %1031 = vmatpush1.msra.mxu0 %v227
    %1032 = vmatprep.subr.mxu0 0.0
    %1033 = vmatpush1.msra.mxu0 %v228
    %1034 = vmatprep.subr.mxu0 0.0
    %1035 = vmatpush1.msra.mxu0 %v229
    %1036 = vmatprep.subr.mxu0 0.0
    %1037 = vmatpush1.msra.mxu0 %v230
    %1038 = vmatprep.subr.mxu0 0.0
    %1039 = vmatpush1.msra.mxu0 %v231
    %1040 = vmatprep.subr.mxu0 0.0
    %1041 = vmatpush1.msra.mxu0 %v232
    %1042 = vmatprep.subr.mxu0 0.0
    %1043 = vmatpush1.msra.mxu0 %v233
    %1044 = vmatprep.subr.mxu0 0.0
    %1045 = vmatpush1.msra.mxu0 %v234
    %1046 = vmatprep.subr.mxu0 0.0
    %1047 = vmatpush1.msra.mxu0 %v235
    %1048 = vmatprep.subr.mxu0 0.0
    %1049 = vmatpush1.msra.mxu0 %v236
    %1050 = vmatprep.subr.mxu0 0.0
    %1051 = vmatpush1.msra.mxu0 %v237
    %1052 = vmatprep.subr.mxu0 0.0
    %1053 = vmatpush1.msra.mxu0 %v238
    %1054 = vmatprep.subr.mxu0 0.0
    %1055 = vmatpush1.msra.mxu0 %v239
    %1056 = vmatprep.subr.mxu0 0.0
    %1057 = vmatpush1.msra.mxu0 %v240
    %1058 = vmatprep.subr.mxu0 0.0
    %1059 = vmatpush1.msra.mxu0 %v241
    %1060 = vmatprep.subr.mxu0 0.0
    %1061 = vmatpush1.msra.mxu0 %v242
    %1062 = vmatprep.subr.mxu0 0.0
    %1063 = vmatpush1.msra.mxu0 %v243
    %1064 = vmatprep.subr.mxu0 0.0
    %1065 = vmatpush1.msra.mxu0 %v244
    %1066 = vmatprep.subr.mxu0 0.0
    %1067 = vmatpush1.msra.mxu0 %v245
    %1068 = vmatprep.subr.mxu0 0.0
    %1069 = vmatpush1.msra.mxu0 %v246
    %1070 = vmatprep.subr.mxu0 0.0
    %1071 = vmatpush1.msra.mxu0 %v247
    %1072 = vmatprep.subr.mxu0 0.0
    %1073 = vmatpush1.msra.mxu0 %v248
    %1074 = vmatprep.subr.mxu0 0.0
    %1075 = vmatpush1.msra.mxu0 %v249
    %1076 = vmatprep.subr.mxu0 0.0
    %1077 = vmatpush1.msra.mxu0 %v250
    %1078 = vmatprep.subr.mxu0 0.0
    %1079 = vmatpush1.msra.mxu0 %v251
    %1080 = vmatprep.subr.mxu0 0.0
    %1081 = vmatpush1.msra.mxu0 %v252
    %1082 = vmatprep.subr.mxu0 0.0
    %1083 = vmatpush1.msra.mxu0 %v253
    %1084 = vmatprep.subr.mxu0 0.0
    %1085 = vmatpush1.msra.mxu0 %v254
    %1086 = vmatprep.subr.mxu0 0.0
    %1087 = vmatpush1.msra.mxu0 %v255
    %1088 = vmatprep.subr.mxu0 0.0
    %1089 = vmatpush1.msra.mxu0 %v256
    %1090 = vmatprep.mubr.f32.mxu0 %v38
    %1091 = vmatmul.mubr.f32.gmra.mrb[0].mxu0 %v37
    %v1092 = vpop.f32.mrb[0].mxu0
    %v1093 = vadd.f32 %v1023, %v1092
    %v1094 = vpop.f32.mrb[0].mxu0
    %1095 = vdwg.mxu0
    %1096 = vmatprep.subr.mxu0 0.0
    %1097 = vmatpush1.msra.mxu0 %v257
    %1098 = vmatprep.subr.mxu0 0.0
    %1099 = vmatpush1.msra.mxu0 %v258
    %1100 = vmatprep.subr.mxu0 0.0
    %1101 = vmatpush1.msra.mxu0 %v259
    %1102 = vmatprep.subr.mxu0 0.0
    %1103 = vmatpush1.msra.mxu0 %v260
    %1104 = vmatprep.subr.mxu0 0.0
    %1105 = vmatpush1.msra.mxu0 %v261
    %1106 = vmatprep.subr.mxu0 0.0
    %1107 = vmatpush1.msra.mxu0 %v262
    %1108 = vmatprep.subr.mxu0 0.0
    %1109 = vmatpush1.msra.mxu0 %v263
    %1110 = vmatprep.subr.mxu0 0.0
    %1111 = vmatpush1.msra.mxu0 %v264
    %1112 = vmatprep.subr.mxu0 0.0
    %1113 = vmatpush1.msra.mxu0 %v265
    %1114 = vmatprep.subr.mxu0 0.0
    %1115 = vmatpush1.msra.mxu0 %v266
    %1116 = vmatprep.subr.mxu0 0.0
    %1117 = vmatpush1.msra.mxu0 %v267
    %1118 = vmatprep.subr.mxu0 0.0
    %1119 = vmatpush1.msra.mxu0 %v268
    %1120 = vmatprep.subr.mxu0 0.0
    %1121 = vmatpush1.msra.mxu0 %v269
    %1122 = vmatprep.subr.mxu0 0.0
    %1123 = vmatpush1.msra.mxu0 %v270
    %1124 = vmatprep.subr.mxu0 0.0
    %1125 = vmatpush1.msra.mxu0 %v271
    %1126 = vmatprep.subr.mxu0 0.0
    %1127 = vmatpush1.msra.mxu0 %v272
    %1128 = vmatprep.subr.mxu0 0.0
    %1129 = vmatpush1.msra.mxu0 %v273
    %1130 = vmatprep.subr.mxu0 0.0
    %1131 = vmatpush1.msra.mxu0 %v274
    %1132 = vmatprep.subr.mxu0 0.0
    %1133 = vmatpush1.msra.mxu0 %v275
    %1134 = vmatprep.subr.mxu0 0.0
    %1135 = vmatpush1.msra.mxu0 %v276
    %1136 = vmatprep.subr.mxu0 0.0
    %1137 = vmatpush1.msra.mxu0 %v277
    %1138 = vmatprep.subr.mxu0 0.0
    %1139 = vmatpush1.msra.mxu0 %v278
    %1140 = vmatprep.subr.mxu0 0.0
    %1141 = vmatpush1.msra.mxu0 %v279
    %1142 = vmatprep.subr.mxu0 0.0
    %1143 = vmatpush1.msra.mxu0 %v280
    %1144 = vmatprep.subr.mxu0 0.0
    %1145 = vmatpush1.msra.mxu0 %v281
    %1146 = vmatprep.subr.mxu0 0.0
    %1147 = vmatpush1.msra.mxu0 %v282
    %1148 = vmatprep.subr.mxu0 0.0
    %1149 = vmatpush1.msra.mxu0 %v283
    %1150 = vmatprep.subr.mxu0 0.0
    %1151 = vmatpush1.msra.mxu0 %v284
    %1152 = vmatprep.subr.mxu0 0.0
    %1153 = vmatpush1.msra.mxu0 %v285
    %1154 = vmatprep.subr.mxu0 0.0
    %1155 = vmatpush1.msra.mxu0 %v286
    %1156 = vmatprep.subr.mxu0 0.0
    %1157 = vmatpush1.msra.mxu0 %v287
    %1158 = vmatprep.subr.mxu0 0.0
    %1159 = vmatpush1.msra.mxu0 %v288
    %1160 = vmatprep.mubr.f32.mxu0 %v40
    %1161 = vmatmul.mubr.f32.gmra.mrb[0].mxu0 %v39
    %v1162 = vpop.f32.mrb[0].mxu0
    %v1163 = vadd.f32 %v1093, %v1162
    %v1164 = vpop.f32.mrb[0].mxu0
    %1165 = vdwg.mxu0
    %1166 = vmatprep.subr.mxu0 0.0
    %1167 = vmatpush1.msra.mxu0 %v289
    %1168 = vmatprep.subr.mxu0 0.0
    %1169 = vmatpush1.msra.mxu0 %v290
    %1170 = vmatprep.subr.mxu0 0.0
    %1171 = vmatpush1.msra.mxu0 %v291
    %1172 = vmatprep.subr.mxu0 0.0
    %1173 = vmatpush1.msra.mxu0 %v292
    %1174 = vmatprep.subr.mxu0 0.0
    %1175 = vmatpush1.msra.mxu0 %v293
    %1176 = vmatprep.subr.mxu0 0.0
    %1177 = vmatpush1.msra.mxu0 %v294
    %1178 = vmatprep.subr.mxu0 0.0
    %1179 = vmatpush1.msra.mxu0 %v295
    %1180 = vmatprep.subr.mxu0 0.0
    %1181 = vmatpush1.msra.mxu0 %v296
    %1182 = vmatprep.subr.mxu0 0.0
    %1183 = vmatpush1.msra.mxu0 %v297
    %1184 = vmatprep.subr.mxu0 0.0
    %1185 = vmatpush1.msra.mxu0 %v298
    %1186 = vmatprep.subr.mxu0 0.0
    %1187 = vmatpush1.msra.mxu0 %v299
    %1188 = vmatprep.subr.mxu0 0.0
    %1189 = vmatpush1.msra.mxu0 %v300
    %1190 = vmatprep.subr.mxu0 0.0
    %1191 = vmatpush1.msra.mxu0 %v301
    %1192 = vmatprep.subr.mxu0 0.0
    %1193 = vmatpush1.msra.mxu0 %v302
    %1194 = vmatprep.subr.mxu0 0.0
    %1195 = vmatpush1.msra.mxu0 %v303
    %1196 = vmatprep.subr.mxu0 0.0
    %1197 = vmatpush1.msra.mxu0 %v304
    %1198 = vmatprep.subr.mxu0 0.0
    %1199 = vmatpush1.msra.mxu0 %v305
    %1200 = vmatprep.subr.mxu0 0.0
    %1201 = vmatpush1.msra.mxu0 %v306
    %1202 = vmatprep.subr.mxu0 0.0
    %1203 = vmatpush1.msra.mxu0 %v307
    %1204 = vmatprep.subr.mxu0 0.0
    %1205 = vmatpush1.msra.mxu0 %v308
    %1206 = vmatprep.subr.mxu0 0.0
    %1207 = vmatpush1.msra.mxu0 %v309
    %1208 = vmatprep.subr.mxu0 0.0
    %1209 = vmatpush1.msra.mxu0 %v310
    %1210 = vmatprep.subr.mxu0 0.0
    %1211 = vmatpush1.msra.mxu0 %v311
    %1212 = vmatprep.subr.mxu0 0.0
    %1213 = vmatpush1.msra.mxu0 %v312
    %1214 = vmatprep.subr.mxu0 0.0
    %1215 = vmatpush1.msra.mxu0 %v313
    %1216 = vmatprep.subr.mxu0 0.0
    %1217 = vmatpush1.msra.mxu0 %v314
    %1218 = vmatprep.subr.mxu0 0.0
    %1219 = vmatpush1.msra.mxu0 %v315
    %1220 = vmatprep.subr.mxu0 0.0
    %1221 = vmatpush1.msra.mxu0 %v316
    %1222 = vmatprep.subr.mxu0 0.0
    %1223 = vmatpush1.msra.mxu0 %v317
    %1224 = vmatprep.subr.mxu0 0.0
    %1225 = vmatpush1.msra.mxu0 %v318
    %1226 = vmatprep.subr.mxu0 0.0
    %1227 = vmatpush1.msra.mxu0 %v319
    %1228 = vmatprep.subr.mxu0 0.0
    %1229 = vmatpush1.msra.mxu0 %v320
    %1230 = vmatprep.mubr.f32.mxu0 %v42
    %1231 = vmatmul.mubr.f32.gmra.mrb[0].mxu0 %v41
    %v1232 = vpop.f32.mrb[0].mxu0
    %v1233 = vadd.f32 %v1163, %v1232
    %v1234 = vpop.f32.mrb[0].mxu0
    %1235 = vdwg.mxu0
    %1236 = vmatprep.subr.mxu0 0.0
    %1237 = vmatpush1.msra.mxu0 %v321
    %1238 = vmatprep.subr.mxu0 0.0
    %1239 = vmatpush1.msra.mxu0 %v322
    %1240 = vmatprep.subr.mxu0 0.0
    %1241 = vmatpush1.msra.mxu0 %v323
    %1242 = vmatprep.subr.mxu0 0.0
    %1243 = vmatpush1.msra.mxu0 %v324
    %1244 = vmatprep.subr.mxu0 0.0
    %1245 = vmatpush1.msra.mxu0 %v325
    %1246 = vmatprep.subr.mxu0 0.0
    %1247 = vmatpush1.msra.mxu0 %v326
    %1248 = vmatprep.subr.mxu0 0.0
    %1249 = vmatpush1.msra.mxu0 %v327
    %1250 = vmatprep.subr.mxu0 0.0
    %1251 = vmatpush1.msra.mxu0 %v328
    %1252 = vmatprep.subr.mxu0 0.0
    %1253 = vmatpush1.msra.mxu0 %v329
    %1254 = vmatprep.subr.mxu0 0.0
    %1255 = vmatpush1.msra.mxu0 %v330
    %1256 = vmatprep.subr.mxu0 0.0
    %1257 = vmatpush1.msra.mxu0 %v331
    %1258 = vmatprep.subr.mxu0 0.0
    %1259 = vmatpush1.msra.mxu0 %v332
    %1260 = vmatprep.subr.mxu0 0.0
    %1261 = vmatpush1.msra.mxu0 %v333
    %1262 = vmatprep.subr.mxu0 0.0
    %1263 = vmatpush1.msra.mxu0 %v334
    %1264 = vmatprep.subr.mxu0 0.0
    %1265 = vmatpush1.msra.mxu0 %v335
    %1266 = vmatprep.subr.mxu0 0.0
    %1267 = vmatpush1.msra.mxu0 %v336
    %1268 = vmatprep.subr.mxu0 0.0
    %1269 = vmatpush1.msra.mxu0 %v337
    %1270 = vmatprep.subr.mxu0 0.0
    %1271 = vmatpush1.msra.mxu0 %v338
    %1272 = vmatprep.subr.mxu0 0.0
    %1273 = vmatpush1.msra.mxu0 %v339
    %1274 = vmatprep.subr.mxu0 0.0
    %1275 = vmatpush1.msra.mxu0 %v340
    %1276 = vmatprep.subr.mxu0 0.0
    %1277 = vmatpush1.msra.mxu0 %v341
    %1278 = vmatprep.subr.mxu0 0.0
    %1279 = vmatpush1.msra.mxu0 %v342
    %1280 = vmatprep.subr.mxu0 0.0
    %1281 = vmatpush1.msra.mxu0 %v343
    %1282 = vmatprep.subr.mxu0 0.0
    %1283 = vmatpush1.msra.mxu0 %v344
    %1284 = vmatprep.subr.mxu0 0.0
    %1285 = vmatpush1.msra.mxu0 %v345
    %1286 = vmatprep.subr.mxu0 0.0
    %1287 = vmatpush1.msra.mxu0 %v346
    %1288 = vmatprep.subr.mxu0 0.0
    %1289 = vmatpush1.msra.mxu0 %v347
    %1290 = vmatprep.subr.mxu0 0.0
    %1291 = vmatpush1.msra.mxu0 %v348
    %1292 = vmatprep.subr.mxu0 0.0
    %1293 = vmatpush1.msra.mxu0 %v349
    %1294 = vmatprep.subr.mxu0 0.0
    %1295 = vmatpush1.msra.mxu0 %v350
    %1296 = vmatprep.subr.mxu0 0.0
    %1297 = vmatpush1.msra.mxu0 %v351
    %1298 = vmatprep.subr.mxu0 0.0
    %1299 = vmatpush1.msra.mxu0 %v352
    %1300 = vmatprep.mubr.f32.mxu0 %v44
    %1301 = vmatmul.mubr.f32.gmra.mrb[0].mxu0 %v43
    %v1302 = vpop.f32.mrb[0].mxu0
    %v1303 = vadd.f32 %v1233, %v1302
    %v1304 = vpop.f32.mrb[0].mxu0
    %1305 = vdwg.mxu0
    %1306 = vmatprep.subr.mxu0 0.0
    %1307 = vmatpush1.msra.mxu0 %v353
    %1308 = vmatprep.subr.mxu0 0.0
    %1309 = vmatpush1.msra.mxu0 %v354
    %1310 = vmatprep.subr.mxu0 0.0
    %1311 = vmatpush1.msra.mxu0 %v355
    %1312 = vmatprep.subr.mxu0 0.0
    %1313 = vmatpush1.msra.mxu0 %v356
    %1314 = vmatprep.subr.mxu0 0.0
    %1315 = vmatpush1.msra.mxu0 %v357
    %1316 = vmatprep.subr.mxu0 0.0
    %1317 = vmatpush1.msra.mxu0 %v358
    %1318 = vmatprep.subr.mxu0 0.0
    %1319 = vmatpush1.msra.mxu0 %v359
    %1320 = vmatprep.subr.mxu0 0.0
    %1321 = vmatpush1.msra.mxu0 %v360
    %1322 = vmatprep.subr.mxu0 0.0
    %1323 = vmatpush1.msra.mxu0 %v361
    %1324 = vmatprep.subr.mxu0 0.0
    %1325 = vmatpush1.msra.mxu0 %v362
    %1326 = vmatprep.subr.mxu0 0.0
    %1327 = vmatpush1.msra.mxu0 %v363
    %1328 = vmatprep.subr.mxu0 0.0
    %1329 = vmatpush1.msra.mxu0 %v364
    %1330 = vmatprep.subr.mxu0 0.0
    %1331 = vmatpush1.msra.mxu0 %v365
    %1332 = vmatprep.subr.mxu0 0.0
    %1333 = vmatpush1.msra.mxu0 %v366
    %1334 = vmatprep.subr.mxu0 0.0
    %1335 = vmatpush1.msra.mxu0 %v367
    %1336 = vmatprep.subr.mxu0 0.0
    %1337 = vmatpush1.msra.mxu0 %v368
    %1338 = vmatprep.subr.mxu0 0.0
    %1339 = vmatpush1.msra.mxu0 %v369
    %1340 = vmatprep.subr.mxu0 0.0
    %1341 = vmatpush1.msra.mxu0 %v370
    %1342 = vmatprep.subr.mxu0 0.0
    %1343 = vmatpush1.msra.mxu0 %v371
    %1344 = vmatprep.subr.mxu0 0.0
    %1345 = vmatpush1.msra.mxu0 %v372
    %1346 = vmatprep.subr.mxu0 0.0
    %1347 = vmatpush1.msra.mxu0 %v373
    %1348 = vmatprep.subr.mxu0 0.0
    %1349 = vmatpush1.msra.mxu0 %v374
    %1350 = vmatprep.subr.mxu0 0.0
    %1351 = vmatpush1.msra.mxu0 %v375
    %1352 = vmatprep.subr.mxu0 0.0
    %1353 = vmatpush1.msra.mxu0 %v376
    %1354 = vmatprep.subr.mxu0 0.0
    %1355 = vmatpush1.msra.mxu0 %v377
    %1356 = vmatprep.subr.mxu0 0.0
    %1357 = vmatpush1.msra.mxu0 %v378
    %1358 = vmatprep.subr.mxu0 0.0
    %1359 = vmatpush1.msra.mxu0 %v379
    %1360 = vmatprep.subr.mxu0 0.0
    %1361 = vmatpush1.msra.mxu0 %v380
    %1362 = vmatprep.subr.mxu0 0.0
    %1363 = vmatpush1.msra.mxu0 %v381
    %1364 = vmatprep.subr.mxu0 0.0
    %1365 = vmatpush1.msra.mxu0 %v382
    %1366 = vmatprep.subr.mxu0 0.0
    %1367 = vmatpush1.msra.mxu0 %v383
    %1368 = vmatprep.subr.mxu0 0.0
    %1369 = vmatpush1.msra.mxu0 %v384
    %1370 = vmatprep.mubr.f32.mxu0 %v46
    %1371 = vmatmul.mubr.f32.gmra.mrb[0].mxu0 %v45
    %v1372 = vpop.f32.mrb[0].mxu0
    %v1373 = vadd.f32 %v1303, %v1372
    %v1374 = vpop.f32.mrb[0].mxu0
    %1375 = vdwg.mxu0
    %1376 = vmatprep.subr.mxu0 0.0
    %1377 = vmatpush1.msra.mxu0 %v385
    %1378 = vmatprep.subr.mxu0 0.0
    %1379 = vmatpush1.msra.mxu0 %v386
    %1380 = vmatprep.subr.mxu0 0.0
    %1381 = vmatpush1.msra.mxu0 %v387
    %1382 = vmatprep.subr.mxu0 0.0
    %1383 = vmatpush1.msra.mxu0 %v388
    %1384 = vmatprep.subr.mxu0 0.0
    %1385 = vmatpush1.msra.mxu0 %v389
    %1386 = vmatprep.subr.mxu0 0.0
    %1387 = vmatpush1.msra.mxu0 %v390
    %1388 = vmatprep.subr.mxu0 0.0
    %1389 = vmatpush1.msra.mxu0 %v391
    %1390 = vmatprep.subr.mxu0 0.0
    %1391 = vmatpush1.msra.mxu0 %v392
    %1392 = vmatprep.subr.mxu0 0.0
    %1393 = vmatpush1.msra.mxu0 %v393
    %1394 = vmatprep.subr.mxu0 0.0
    %1395 = vmatpush1.msra.mxu0 %v394
    %1396 = vmatprep.subr.mxu0 0.0
    %1397 = vmatpush1.msra.mxu0 %v395
    %1398 = vmatprep.subr.mxu0 0.0
    %1399 = vmatpush1.msra.mxu0 %v396
    %1400 = vmatprep.subr.mxu0 0.0
    %1401 = vmatpush1.msra.mxu0 %v397
    %1402 = vmatprep.subr.mxu0 0.0
    %1403 = vmatpush1.msra.mxu0 %v398
    %1404 = vmatprep.subr.mxu0 0.0
    %1405 = vmatpush1.msra.mxu0 %v399
    %1406 = vmatprep.subr.mxu0 0.0
    %1407 = vmatpush1.msra.mxu0 %v400
    %1408 = vmatprep.subr.mxu0 0.0
    %1409 = vmatpush1.msra.mxu0 %v401
    %1410 = vmatprep.subr.mxu0 0.0
    %1411 = vmatpush1.msra.mxu0 %v402
    %1412 = vmatprep.subr.mxu0 0.0
    %1413 = vmatpush1.msra.mxu0 %v403
    %1414 = vmatprep.subr.mxu0 0.0
    %1415 = vmatpush1.msra.mxu0 %v404
    %1416 = vmatprep.subr.mxu0 0.0
    %1417 = vmatpush1.msra.mxu0 %v405
    %1418 = vmatprep.subr.mxu0 0.0
    %1419 = vmatpush1.msra.mxu0 %v406
    %1420 = vmatprep.subr.mxu0 0.0
    %1421 = vmatpush1.msra.mxu0 %v407
    %1422 = vmatprep.subr.mxu0 0.0
    %1423 = vmatpush1.msra.mxu0 %v408
    %1424 = vmatprep.subr.mxu0 0.0
    %1425 = vmatpush1.msra.mxu0 %v409
    %1426 = vmatprep.subr.mxu0 0.0
    %1427 = vmatpush1.msra.mxu0 %v410
    %1428 = vmatprep.subr.mxu0 0.0
    %1429 = vmatpush1.msra.mxu0 %v411
    %1430 = vmatprep.subr.mxu0 0.0
    %1431 = vmatpush1.msra.mxu0 %v412
    %1432 = vmatprep.subr.mxu0 0.0
    %1433 = vmatpush1.msra.mxu0 %v413
    %1434 = vmatprep.subr.mxu0 0.0
    %1435 = vmatpush1.msra.mxu0 %v414
    %1436 = vmatprep.subr.mxu0 0.0
    %1437 = vmatpush1.msra.mxu0 %v415
    %1438 = vmatprep.subr.mxu0 0.0
    %1439 = vmatpush1.msra.mxu0 %v416
    %1440 = vmatprep.mubr.f32.mxu0 %v48
    %1441 = vmatmul.mubr.f32.gmra.mrb[0].mxu0 %v47
    %v1442 = vpop.f32.mrb[0].mxu0
    %v1443 = vadd.f32 %v1373, %v1442
    %v1444 = vpop.f32.mrb[0].mxu0
    %1445 = vdwg.mxu0
    %1446 = vmatprep.subr.mxu0 0.0
    %1447 = vmatpush1.msra.mxu0 %v417
    %1448 = vmatprep.subr.mxu0 0.0
    %1449 = vmatpush1.msra.mxu0 %v418
    %1450 = vmatprep.subr.mxu0 0.0
    %1451 = vmatpush1.msra.mxu0 %v419
    %1452 = vmatprep.subr.mxu0 0.0
    %1453 = vmatpush1.msra.mxu0 %v420
    %1454 = vmatprep.subr.mxu0 0.0
    %1455 = vmatpush1.msra.mxu0 %v421
    %1456 = vmatprep.subr.mxu0 0.0
    %1457 = vmatpush1.msra.mxu0 %v422
    %1458 = vmatprep.subr.mxu0 0.0
    %1459 = vmatpush1.msra.mxu0 %v423
    %1460 = vmatprep.subr.mxu0 0.0
    %1461 = vmatpush1.msra.mxu0 %v424
    %1462 = vmatprep.subr.mxu0 0.0
    %1463 = vmatpush1.msra.mxu0 %v425
    %1464 = vmatprep.subr.mxu0 0.0
    %1465 = vmatpush1.msra.mxu0 %v426
    %1466 = vmatprep.subr.mxu0 0.0
    %1467 = vmatpush1.msra.mxu0 %v427
    %1468 = vmatprep.subr.mxu0 0.0
    %1469 = vmatpush1.msra.mxu0 %v428
    %1470 = vmatprep.subr.mxu0 0.0
    %1471 = vmatpush1.msra.mxu0 %v429
    %1472 = vmatprep.subr.mxu0 0.0
    %1473 = vmatpush1.msra.mxu0 %v430
    %1474 = vmatprep.subr.mxu0 0.0
    %1475 = vmatpush1.msra.mxu0 %v431
    %1476 = vmatprep.subr.mxu0 0.0
    %1477 = vmatpush1.msra.mxu0 %v432
    %1478 = vmatprep.subr.mxu0 0.0
    %1479 = vmatpush1.msra.mxu0 %v433
    %1480 = vmatprep.subr.mxu0 0.0
    %1481 = vmatpush1.msra.mxu0 %v434
    %1482 = vmatprep.subr.mxu0 0.0
    %1483 = vmatpush1.msra.mxu0 %v435
    %1484 = vmatprep.subr.mxu0 0.0
    %1485 = vmatpush1.msra.mxu0 %v436
    %1486 = vmatprep.subr.mxu0 0.0
    %1487 = vmatpush1.msra.mxu0 %v437
    %1488 = vmatprep.subr.mxu0 0.0
    %1489 = vmatpush1.msra.mxu0 %v438
    %1490 = vmatprep.subr.mxu0 0.0
    %1491 = vmatpush1.msra.mxu0 %v439
    %1492 = vmatprep.subr.mxu0 0.0
    %1493 = vmatpush1.msra.mxu0 %v440
    %1494 = vmatprep.subr.mxu0 0.0
    %1495 = vmatpush1.msra.mxu0 %v441
    %1496 = vmatprep.subr.mxu0 0.0
    %1497 = vmatpush1.msra.mxu0 %v442
    %1498 = vmatprep.subr.mxu0 0.0
    %1499 = vmatpush1.msra.mxu0 %v443
    %1500 = vmatprep.subr.mxu0 0.0
    %1501 = vmatpush1.msra.mxu0 %v444
    %1502 = vmatprep.subr.mxu0 0.0
    %1503 = vmatpush1.msra.mxu0 %v445
    %1504 = vmatprep.subr.mxu0 0.0
    %1505 = vmatpush1.msra.mxu0 %v446
    %1506 = vmatprep.subr.mxu0 0.0
    %1507 = vmatpush1.msra.mxu0 %v447
    %1508 = vmatprep.subr.mxu0 0.0
    %1509 = vmatpush1.msra.mxu0 %v448
    %1510 = vmatprep.mubr.f32.mxu0 %v50
    %1511 = vmatmul.mubr.f32.gmra.mrb[0].mxu0 %v49
    %v1512 = vpop.f32.mrb[0].mxu0
    %v1513 = vadd.f32 %v1443, %v1512
    %v1514 = vpop.f32.mrb[0].mxu0
    %1515 = vdwg.mxu0
    %1516 = vmatprep.subr.mxu0 0.0
    %1517 = vmatpush1.msra.mxu0 %v449
    %1518 = vmatprep.subr.mxu0 0.0
    %1519 = vmatpush1.msra.mxu0 %v450
    %1520 = vmatprep.subr.mxu0 0.0
    %1521 = vmatpush1.msra.mxu0 %v451
    %1522 = vmatprep.subr.mxu0 0.0
    %1523 = vmatpush1.msra.mxu0 %v452
    %1524 = vmatprep.subr.mxu0 0.0
    %1525 = vmatpush1.msra.mxu0 %v453
    %1526 = vmatprep.subr.mxu0 0.0
    %1527 = vmatpush1.msra.mxu0 %v454
    %1528 = vmatprep.subr.mxu0 0.0
    %1529 = vmatpush1.msra.mxu0 %v455
    %1530 = vmatprep.subr.mxu0 0.0
    %1531 = vmatpush1.msra.mxu0 %v456
    %1532 = vmatprep.subr.mxu0 0.0
    %1533 = vmatpush1.msra.mxu0 %v457
    %1534 = vmatprep.subr.mxu0 0.0
    %1535 = vmatpush1.msra.mxu0 %v458
    %1536 = vmatprep.subr.mxu0 0.0
    %1537 = vmatpush1.msra.mxu0 %v459
    %1538 = vmatprep.subr.mxu0 0.0
    %1539 = vmatpush1.msra.mxu0 %v460
    %1540 = vmatprep.subr.mxu0 0.0
    %1541 = vmatpush1.msra.mxu0 %v461
    %1542 = vmatprep.subr.mxu0 0.0
    %1543 = vmatpush1.msra.mxu0 %v462
    %1544 = vmatprep.subr.mxu0 0.0
    %1545 = vmatpush1.msra.mxu0 %v463
    %1546 = vmatprep.subr.mxu0 0.0
    %1547 = vmatpush1.msra.mxu0 %v464
    %1548 = vmatprep.subr.mxu0 0.0
    %1549 = vmatpush1.msra.mxu0 %v465
    %1550 = vmatprep.subr.mxu0 0.0
    %1551 = vmatpush1.msra.mxu0 %v466
    %1552 = vmatprep.subr.mxu0 0.0
    %1553 = vmatpush1.msra.mxu0 %v467
    %1554 = vmatprep.subr.mxu0 0.0
    %1555 = vmatpush1.msra.mxu0 %v468
    %1556 = vmatprep.subr.mxu0 0.0
    %1557 = vmatpush1.msra.mxu0 %v469
    %1558 = vmatprep.subr.mxu0 0.0
    %1559 = vmatpush1.msra.mxu0 %v470
    %1560 = vmatprep.subr.mxu0 0.0
    %1561 = vmatpush1.msra.mxu0 %v471
    %1562 = vmatprep.subr.mxu0 0.0
    %1563 = vmatpush1.msra.mxu0 %v472
    %1564 = vmatprep.subr.mxu0 0.0
    %1565 = vmatpush1.msra.mxu0 %v473
    %1566 = vmatprep.subr.mxu0 0.0
    %1567 = vmatpush1.msra.mxu0 %v474
    %1568 = vmatprep.subr.mxu0 0.0
    %1569 = vmatpush1.msra.mxu0 %v475
    %1570 = vmatprep.subr.mxu0 0.0
    %1571 = vmatpush1.msra.mxu0 %v476
    %1572 = vmatprep.subr.mxu0 0.0
    %1573 = vmatpush1.msra.mxu0 %v477
    %1574 = vmatprep.subr.mxu0 0.0
    %1575 = vmatpush1.msra.mxu0 %v478
    %1576 = vmatprep.subr.mxu0 0.0
    %1577 = vmatpush1.msra.mxu0 %v479
    %1578 = vmatprep.subr.mxu0 0.0
    %1579 = vmatpush1.msra.mxu0 %v480
    %1580 = vmatprep.mubr.f32.mxu0 %v52
    %1581 = vmatmul.mubr.f32.gmra.mrb[0].mxu0 %v51
    %v1582 = vpop.f32.mrb[0].mxu0
    %v1583 = vadd.f32 %v1513, %v1582
    %v1584 = vpop.f32.mrb[0].mxu0
    %1585 = vdwg.mxu0
    %1586 = vmatprep.subr.mxu0 0.0
    %1587 = vmatpush1.msra.mxu0 %v481
    %1588 = vmatprep.subr.mxu0 0.0
    %1589 = vmatpush1.msra.mxu0 %v482
    %1590 = vmatprep.subr.mxu0 0.0
    %1591 = vmatpush1.msra.mxu0 %v483
    %1592 = vmatprep.subr.mxu0 0.0
    %1593 = vmatpush1.msra.mxu0 %v484
    %1594 = vmatprep.subr.mxu0 0.0
    %1595 = vmatpush1.msra.mxu0 %v485
    %1596 = vmatprep.subr.mxu0 0.0
    %1597 = vmatpush1.msra.mxu0 %v486
    %1598 = vmatprep.subr.mxu0 0.0
    %1599 = vmatpush1.msra.mxu0 %v487
    %1600 = vmatprep.subr.mxu0 0.0
    %1601 = vmatpush1.msra.mxu0 %v488
    %1602 = vmatprep.subr.mxu0 0.0
    %1603 = vmatpush1.msra.mxu0 %v489
    %1604 = vmatprep.subr.mxu0 0.0
    %1605 = vmatpush1.msra.mxu0 %v490
    %1606 = vmatprep.subr.mxu0 0.0
    %1607 = vmatpush1.msra.mxu0 %v491
    %1608 = vmatprep.subr.mxu0 0.0
    %1609 = vmatpush1.msra.mxu0 %v492
    %1610 = vmatprep.subr.mxu0 0.0
    %1611 = vmatpush1.msra.mxu0 %v493
    %1612 = vmatprep.subr.mxu0 0.0
    %1613 = vmatpush1.msra.mxu0 %v494
    %1614 = vmatprep.subr.mxu0 0.0
    %1615 = vmatpush1.msra.mxu0 %v495
    %1616 = vmatprep.subr.mxu0 0.0
    %1617 = vmatpush1.msra.mxu0 %v496
    %1618 = vmatprep.subr.mxu0 0.0
    %1619 = vmatpush1.msra.mxu0 %v497
    %1620 = vmatprep.subr.mxu0 0.0
    %1621 = vmatpush1.msra.mxu0 %v498
    %1622 = vmatprep.subr.mxu0 0.0
    %1623 = vmatpush1.msra.mxu0 %v499
    %1624 = vmatprep.subr.mxu0 0.0
    %1625 = vmatpush1.msra.mxu0 %v500
    %1626 = vmatprep.subr.mxu0 0.0
    %1627 = vmatpush1.msra.mxu0 %v501
    %1628 = vmatprep.subr.mxu0 0.0
    %1629 = vmatpush1.msra.mxu0 %v502
    %1630 = vmatprep.subr.mxu0 0.0
    %1631 = vmatpush1.msra.mxu0 %v503
    %1632 = vmatprep.subr.mxu0 0.0
    %1633 = vmatpush1.msra.mxu0 %v504
    %1634 = vmatprep.subr.mxu0 0.0
    %1635 = vmatpush1.msra.mxu0 %v505
    %1636 = vmatprep.subr.mxu0 0.0
    %1637 = vmatpush1.msra.mxu0 %v506
    %1638 = vmatprep.subr.mxu0 0.0
    %1639 = vmatpush1.msra.mxu0 %v507
    %1640 = vmatprep.subr.mxu0 0.0
    %1641 = vmatpush1.msra.mxu0 %v508
    %1642 = vmatprep.subr.mxu0 0.0
    %1643 = vmatpush1.msra.mxu0 %v509
    %1644 = vmatprep.subr.mxu0 0.0
    %1645 = vmatpush1.msra.mxu0 %v510
    %1646 = vmatprep.subr.mxu0 0.0
    %1647 = vmatpush1.msra.mxu0 %v511
    %1648 = vmatprep.subr.mxu0 0.0
    %1649 = vmatpush1.msra.mxu0 %v512
    %1650 = vmatprep.mubr.f32.mxu0 %v54
    %1651 = vmatmul.mubr.f32.gmra.mrb[0].mxu0 %v53
    %v1652 = vpop.f32.mrb[0].mxu0
    %v1653 = vadd.f32 %v1583, %v1652
    %v1654 = vpop.f32.mrb[0].mxu0
    %1655 = vdwg.mxu0
    %1656 = vmatprep.subr.mxu0 0.0
    %1657 = vmatpush1.msra.mxu0 %v513
    %1658 = vmatprep.subr.mxu0 0.0
    %1659 = vmatpush1.msra.mxu0 %v514
    %1660 = vmatprep.subr.mxu0 0.0
    %1661 = vmatpush1.msra.mxu0 %v515
    %1662 = vmatprep.subr.mxu0 0.0
    %1663 = vmatpush1.msra.mxu0 %v516
    %1664 = vmatprep.subr.mxu0 0.0
    %1665 = vmatpush1.msra.mxu0 %v517
    %1666 = vmatprep.subr.mxu0 0.0
    %1667 = vmatpush1.msra.mxu0 %v518
    %1668 = vmatprep.subr.mxu0 0.0
    %1669 = vmatpush1.msra.mxu0 %v519
    %1670 = vmatprep.subr.mxu0 0.0
    %1671 = vmatpush1.msra.mxu0 %v520
    %1672 = vmatprep.subr.mxu0 0.0
    %1673 = vmatpush1.msra.mxu0 %v521
    %1674 = vmatprep.subr.mxu0 0.0
    %1675 = vmatpush1.msra.mxu0 %v522
    %1676 = vmatprep.subr.mxu0 0.0
    %1677 = vmatpush1.msra.mxu0 %v523
    %1678 = vmatprep.subr.mxu0 0.0
    %1679 = vmatpush1.msra.mxu0 %v524
    %1680 = vmatprep.subr.mxu0 0.0
    %1681 = vmatpush1.msra.mxu0 %v525
    %1682 = vmatprep.subr.mxu0 0.0
    %1683 = vmatpush1.msra.mxu0 %v526
    %1684 = vmatprep.subr.mxu0 0.0
    %1685 = vmatpush1.msra.mxu0 %v527
    %1686 = vmatprep.subr.mxu0 0.0
    %1687 = vmatpush1.msra.mxu0 %v528
    %1688 = vmatprep.subr.mxu0 0.0
    %1689 = vmatpush1.msra.mxu0 %v529
    %1690 = vmatprep.subr.mxu0 0.0
    %1691 = vmatpush1.msra.mxu0 %v530
    %1692 = vmatprep.subr.mxu0 0.0
    %1693 = vmatpush1.msra.mxu0 %v531
    %1694 = vmatprep.subr.mxu0 0.0
    %1695 = vmatpush1.msra.mxu0 %v532
    %1696 = vmatprep.subr.mxu0 0.0
    %1697 = vmatpush1.msra.mxu0 %v533
    %1698 = vmatprep.subr.mxu0 0.0
    %1699 = vmatpush1.msra.mxu0 %v534
    %1700 = vmatprep.subr.mxu0 0.0
    %1701 = vmatpush1.msra.mxu0 %v535
    %1702 = vmatprep.subr.mxu0 0.0
    %1703 = vmatpush1.msra.mxu0 %v536
    %1704 = vmatprep.subr.mxu0 0.0
    %1705 = vmatpush1.msra.mxu0 %v537
    %1706 = vmatprep.subr.mxu0 0.0
    %1707 = vmatpush1.msra.mxu0 %v538
    %1708 = vmatprep.subr.mxu0 0.0
    %1709 = vmatpush1.msra.mxu0 %v539
    %1710 = vmatprep.subr.mxu0 0.0
    %1711 = vmatpush1.msra.mxu0 %v540
    %1712 = vmatprep.subr.mxu0 0.0
    %1713 = vmatpush1.msra.mxu0 %v541
    %1714 = vmatprep.subr.mxu0 0.0
    %1715 = vmatpush1.msra.mxu0 %v542
    %1716 = vmatprep.subr.mxu0 0.0
    %1717 = vmatpush1.msra.mxu0 %v543
    %1718 = vmatprep.subr.mxu0 0.0
    %1719 = vmatpush1.msra.mxu0 %v544
    %1720 = vmatprep.mubr.f32.mxu0 %v56
    %1721 = vmatmul.mubr.f32.gmra.mrb[0].mxu0 %v55
    %v1722 = vpop.f32.mrb[0].mxu0
    %v1723 = vadd.f32 %v1653, %v1722
    %v1724 = vpop.f32.mrb[0].mxu0
    %1725 = vdwg.mxu0
    %1726 = vmatprep.subr.mxu0 0.0
    %1727 = vmatpush1.msra.mxu0 %v545
    %1728 = vmatprep.subr.mxu0 0.0
    %1729 = vmatpush1.msra.mxu0 %v546
    %1730 = vmatprep.subr.mxu0 0.0
    %1731 = vmatpush1.msra.mxu0 %v547
    %1732 = vmatprep.subr.mxu0 0.0
    %1733 = vmatpush1.msra.mxu0 %v548
    %1734 = vmatprep.subr.mxu0 0.0
    %1735 = vmatpush1.msra.mxu0 %v549
    %1736 = vmatprep.subr.mxu0 0.0
    %1737 = vmatpush1.msra.mxu0 %v550
    %1738 = vmatprep.subr.mxu0 0.0
    %1739 = vmatpush1.msra.mxu0 %v551
    %1740 = vmatprep.subr.mxu0 0.0
    %1741 = vmatpush1.msra.mxu0 %v552
    %1742 = vmatprep.subr.mxu0 0.0
    %1743 = vmatpush1.msra.mxu0 %v553
    %1744 = vmatprep.subr.mxu0 0.0
    %1745 = vmatpush1.msra.mxu0 %v554
    %1746 = vmatprep.subr.mxu0 0.0
    %1747 = vmatpush1.msra.mxu0 %v555
    %1748 = vmatprep.subr.mxu0 0.0
    %1749 = vmatpush1.msra.mxu0 %v556
    %1750 = vmatprep.subr.mxu0 0.0
    %1751 = vmatpush1.msra.mxu0 %v557
    %1752 = vmatprep.subr.mxu0 0.0
    %1753 = vmatpush1.msra.mxu0 %v558
    %1754 = vmatprep.subr.mxu0 0.0
    %1755 = vmatpush1.msra.mxu0 %v559
    %1756 = vmatprep.subr.mxu0 0.0
    %1757 = vmatpush1.msra.mxu0 %v560
    %1758 = vmatprep.subr.mxu0 0.0
    %1759 = vmatpush1.msra.mxu0 %v561
    %1760 = vmatprep.subr.mxu0 0.0
    %1761 = vmatpush1.msra.mxu0 %v562
    %1762 = vmatprep.subr.mxu0 0.0
    %1763 = vmatpush1.msra.mxu0 %v563
    %1764 = vmatprep.subr.mxu0 0.0
    %1765 = vmatpush1.msra.mxu0 %v564
    %1766 = vmatprep.subr.mxu0 0.0
    %1767 = vmatpush1.msra.mxu0 %v565
    %1768 = vmatprep.subr.mxu0 0.0
    %1769 = vmatpush1.msra.mxu0 %v566
    %1770 = vmatprep.subr.mxu0 0.0
    %1771 = vmatpush1.msra.mxu0 %v567
    %1772 = vmatprep.subr.mxu0 0.0
    %1773 = vmatpush1.msra.mxu0 %v568
    %1774 = vmatprep.subr.mxu0 0.0
    %1775 = vmatpush1.msra.mxu0 %v569
    %1776 = vmatprep.subr.mxu0 0.0
    %1777 = vmatpush1.msra.mxu0 %v570
    %1778 = vmatprep.subr.mxu0 0.0
    %1779 = vmatpush1.msra.mxu0 %v571
    %1780 = vmatprep.subr.mxu0 0.0
    %1781 = vmatpush1.msra.mxu0 %v572
    %1782 = vmatprep.subr.mxu0 0.0
    %1783 = vmatpush1.msra.mxu0 %v573
    %1784 = vmatprep.subr.mxu0 0.0
    %1785 = vmatpush1.msra.mxu0 %v574
    %1786 = vmatprep.subr.mxu0 0.0
    %1787 = vmatpush1.msra.mxu0 %v575
    %1788 = vmatprep.subr.mxu0 0.0
    %1789 = vmatpush1.msra.mxu0 %v576
    %1790 = vmatprep.mubr.f32.mxu0 %v58
    %1791 = vmatmul.mubr.f32.gmra.mrb[0].mxu0 %v57
    %v1792 = vpop.f32.mrb[0].mxu0
    %v1793 = vadd.f32 %v1723, %v1792
    %v1794 = vpop.f32.mrb[0].mxu0
    %1795 = vdwg.mxu0
    %1796 = vmatprep.subr.mxu0 0.0
    %1797 = vmatpush1.msra.mxu0 %v577
    %1798 = vmatprep.subr.mxu0 0.0
    %1799 = vmatpush1.msra.mxu0 %v578
    %1800 = vmatprep.subr.mxu0 0.0
    %1801 = vmatpush1.msra.mxu0 %v579
    %1802 = vmatprep.subr.mxu0 0.0
    %1803 = vmatpush1.msra.mxu0 %v580
    %1804 = vmatprep.subr.mxu0 0.0
    %1805 = vmatpush1.msra.mxu0 %v581
    %1806 = vmatprep.subr.mxu0 0.0
    %1807 = vmatpush1.msra.mxu0 %v582
    %1808 = vmatprep.subr.mxu0 0.0
    %1809 = vmatpush1.msra.mxu0 %v583
    %1810 = vmatprep.subr.mxu0 0.0
    %1811 = vmatpush1.msra.mxu0 %v584
    %1812 = vmatprep.subr.mxu0 0.0
    %1813 = vmatpush1.msra.mxu0 %v585
    %1814 = vmatprep.subr.mxu0 0.0
    %1815 = vmatpush1.msra.mxu0 %v586
    %1816 = vmatprep.subr.mxu0 0.0
    %1817 = vmatpush1.msra.mxu0 %v587
    %1818 = vmatprep.subr.mxu0 0.0
    %1819 = vmatpush1.msra.mxu0 %v588
    %1820 = vmatprep.subr.mxu0 0.0
    %1821 = vmatpush1.msra.mxu0 %v589
    %1822 = vmatprep.subr.mxu0 0.0
    %1823 = vmatpush1.msra.mxu0 %v590
    %1824 = vmatprep.subr.mxu0 0.0
    %1825 = vmatpush1.msra.mxu0 %v591
    %1826 = vmatprep.subr.mxu0 0.0
    %1827 = vmatpush1.msra.mxu0 %v592
    %1828 = vmatprep.subr.mxu0 0.0
    %1829 = vmatpush1.msra.mxu0 %v593
    %1830 = vmatprep.subr.mxu0 0.0
    %1831 = vmatpush1.msra.mxu0 %v594
    %1832 = vmatprep.subr.mxu0 0.0
    %1833 = vmatpush1.msra.mxu0 %v595
    %1834 = vmatprep.subr.mxu0 0.0
    %1835 = vmatpush1.msra.mxu0 %v596
    %1836 = vmatprep.subr.mxu0 0.0
    %1837 = vmatpush1.msra.mxu0 %v597
    %1838 = vmatprep.subr.mxu0 0.0
    %1839 = vmatpush1.msra.mxu0 %v598
    %1840 = vmatprep.subr.mxu0 0.0
    %1841 = vmatpush1.msra.mxu0 %v599
    %1842 = vmatprep.subr.mxu0 0.0
    %1843 = vmatpush1.msra.mxu0 %v600
    %1844 = vmatprep.subr.mxu0 0.0
    %1845 = vmatpush1.msra.mxu0 %v601
    %1846 = vmatprep.subr.mxu0 0.0
    %1847 = vmatpush1.msra.mxu0 %v602
    %1848 = vmatprep.subr.mxu0 0.0
    %1849 = vmatpush1.msra.mxu0 %v603
    %1850 = vmatprep.subr.mxu0 0.0
    %1851 = vmatpush1.msra.mxu0 %v604
    %1852 = vmatprep.subr.mxu0 0.0
    %1853 = vmatpush1.msra.mxu0 %v605
    %1854 = vmatprep.subr.mxu0 0.0
    %1855 = vmatpush1.msra.mxu0 %v606
    %1856 = vmatprep.subr.mxu0 0.0
    %1857 = vmatpush1.msra.mxu0 %v607
    %1858 = vmatprep.subr.mxu0 0.0
    %1859 = vmatpush1.msra.mxu0 %v608
    %1860 = vmatprep.mubr.f32.mxu0 %v60
    %1861 = vmatmul.mubr.f32.gmra.mrb[0].mxu0 %v59
    %v1862 = vpop.f32.mrb[0].mxu0
    %v1863 = vadd.f32 %v1793, %v1862
    %v1864 = vpop.f32.mrb[0].mxu0
    %1865 = vdwg.mxu0
    %1866 = vmatprep.subr.mxu0 0.0
    %1867 = vmatpush1.msra.mxu0 %v609
    %1868 = vmatprep.subr.mxu0 0.0
    %1869 = vmatpush1.msra.mxu0 %v610
    %1870 = vmatprep.subr.mxu0 0.0
    %1871 = vmatpush1.msra.mxu0 %v611
    %1872 = vmatprep.subr.mxu0 0.0
    %1873 = vmatpush1.msra.mxu0 %v612
    %1874 = vmatprep.subr.mxu0 0.0
    %1875 = vmatpush1.msra.mxu0 %v613
    %1876 = vmatprep.subr.mxu0 0.0
    %1877 = vmatpush1.msra.mxu0 %v614
    %1878 = vmatprep.subr.mxu0 0.0
    %1879 = vmatpush1.msra.mxu0 %v615
    %1880 = vmatprep.subr.mxu0 0.0
    %1881 = vmatpush1.msra.mxu0 %v616
    %1882 = vmatprep.subr.mxu0 0.0
    %1883 = vmatpush1.msra.mxu0 %v617
    %1884 = vmatprep.subr.mxu0 0.0
    %1885 = vmatpush1.msra.mxu0 %v618
    %1886 = vmatprep.subr.mxu0 0.0
    %1887 = vmatpush1.msra.mxu0 %v619
    %1888 = vmatprep.subr.mxu0 0.0
    %1889 = vmatpush1.msra.mxu0 %v620
    %1890 = vmatprep.subr.mxu0 0.0
    %1891 = vmatpush1.msra.mxu0 %v621
    %1892 = vmatprep.subr.mxu0 0.0
    %1893 = vmatpush1.msra.mxu0 %v622
    %1894 = vmatprep.subr.mxu0 0.0
    %1895 = vmatpush1.msra.mxu0 %v623
    %1896 = vmatprep.subr.mxu0 0.0
    %1897 = vmatpush1.msra.mxu0 %v624
    %1898 = vmatprep.subr.mxu0 0.0
    %1899 = vmatpush1.msra.mxu0 %v625
    %1900 = vmatprep.subr.mxu0 0.0
    %1901 = vmatpush1.msra.mxu0 %v626
    %1902 = vmatprep.subr.mxu0 0.0
    %1903 = vmatpush1.msra.mxu0 %v627
    %1904 = vmatprep.subr.mxu0 0.0
    %1905 = vmatpush1.msra.mxu0 %v628
    %1906 = vmatprep.subr.mxu0 0.0
    %1907 = vmatpush1.msra.mxu0 %v629
    %1908 = vmatprep.subr.mxu0 0.0
    %1909 = vmatpush1.msra.mxu0 %v630
    %1910 = vmatprep.subr.mxu0 0.0
    %1911 = vmatpush1.msra.mxu0 %v631
    %1912 = vmatprep.subr.mxu0 0.0
    %1913 = vmatpush1.msra.mxu0 %v632
    %1914 = vmatprep.subr.mxu0 0.0
    %1915 = vmatpush1.msra.mxu0 %v633
    %1916 = vmatprep.subr.mxu0 0.0
    %1917 = vmatpush1.msra.mxu0 %v634
    %1918 = vmatprep.subr.mxu0 0.0
    %1919 = vmatpush1.msra.mxu0 %v635
    %1920 = vmatprep.subr.mxu0 0.0
    %1921 = vmatpush1.msra.mxu0 %v636
    %1922 = vmatprep.subr.mxu0 0.0
    %1923 = vmatpush1.msra.mxu0 %v637
    %1924 = vmatprep.subr.mxu0 0.0
    %1925 = vmatpush1.msra.mxu0 %v638
    %1926 = vmatprep.subr.mxu0 0.0
    %1927 = vmatpush1.msra.mxu0 %v639
    %1928 = vmatprep.subr.mxu0 0.0
    %1929 = vmatpush1.msra.mxu0 %v640
    %1930 = vmatprep.mubr.f32.mxu0 %v62
    %1931 = vmatmul.mubr.f32.gmra.mrb[0].mxu0 %v61
    %v1932 = vpop.f32.mrb[0].mxu0
    %v1933 = vadd.f32 %v1863, %v1932
    %v1934 = vpop.f32.mrb[0].mxu0
    %1935 = vdwg.mxu0
    %1936 = vmatprep.subr.mxu0 0.0
    %1937 = vmatpush1.msra.mxu0 %v641
    %1938 = vmatprep.subr.mxu0 0.0
    %1939 = vmatpush1.msra.mxu0 %v642
    %1940 = vmatprep.subr.mxu0 0.0
    %1941 = vmatpush1.msra.mxu0 %v643
    %1942 = vmatprep.subr.mxu0 0.0
    %1943 = vmatpush1.msra.mxu0 %v644
    %1944 = vmatprep.subr.mxu0 0.0
    %1945 = vmatpush1.msra.mxu0 %v645
    %1946 = vmatprep.subr.mxu0 0.0
    %1947 = vmatpush1.msra.mxu0 %v646
    %1948 = vmatprep.subr.mxu0 0.0
    %1949 = vmatpush1.msra.mxu0 %v647
    %1950 = vmatprep.subr.mxu0 0.0
    %1951 = vmatpush1.msra.mxu0 %v648
    %1952 = vmatprep.subr.mxu0 0.0
    %1953 = vmatpush1.msra.mxu0 %v649
    %1954 = vmatprep.subr.mxu0 0.0
    %1955 = vmatpush1.msra.mxu0 %v650
    %1956 = vmatprep.subr.mxu0 0.0
    %1957 = vmatpush1.msra.mxu0 %v651
    %1958 = vmatprep.subr.mxu0 0.0
    %1959 = vmatpush1.msra.mxu0 %v652
    %1960 = vmatprep.subr.mxu0 0.0
    %1961 = vmatpush1.msra.mxu0 %v653
    %1962 = vmatprep.subr.mxu0 0.0
    %1963 = vmatpush1.msra.mxu0 %v654
    %1964 = vmatprep.subr.mxu0 0.0
    %1965 = vmatpush1.msra.mxu0 %v655
    %1966 = vmatprep.subr.mxu0 0.0
    %1967 = vmatpush1.msra.mxu0 %v656
    %1968 = vmatprep.subr.mxu0 0.0
    %1969 = vmatpush1.msra.mxu0 %v657
    %1970 = vmatprep.subr.mxu0 0.0
    %1971 = vmatpush1.msra.mxu0 %v658
    %1972 = vmatprep.subr.mxu0 0.0
    %1973 = vmatpush1.msra.mxu0 %v659
    %1974 = vmatprep.subr.mxu0 0.0
    %1975 = vmatpush1.msra.mxu0 %v660
    %1976 = vmatprep.subr.mxu0 0.0
    %1977 = vmatpush1.msra.mxu0 %v661
    %1978 = vmatprep.subr.mxu0 0.0
    %1979 = vmatpush1.msra.mxu0 %v662
    %1980 = vmatprep.subr.mxu0 0.0
    %1981 = vmatpush1.msra.mxu0 %v663
    %1982 = vmatprep.subr.mxu0 0.0
    %1983 = vmatpush1.msra.mxu0 %v664
    %1984 = vmatprep.subr.mxu0 0.0
    %1985 = vmatpush1.msra.mxu0 0.0
    %1986 = vmatprep.subr.mxu0 0.0
    %1987 = vmatpush1.msra.mxu0 0.0
    %1988 = vmatprep.subr.mxu0 0.0
    %1989 = vmatpush1.msra.mxu0 0.0
    %1990 = vmatprep.subr.mxu0 0.0
    %1991 = vmatpush1.msra.mxu0 0.0
    %1992 = vmatprep.subr.mxu0 0.0
    %1993 = vmatpush1.msra.mxu0 0.0
    %1994 = vmatprep.subr.mxu0 0.0
    %1995 = vmatpush1.msra.mxu0 0.0
    %1996 = vmatprep.subr.mxu0 0.0
    %1997 = vmatpush1.msra.mxu0 0.0
    %1998 = vmatprep.subr.mxu0 0.0
    %1999 = vmatpush1.msra.mxu0 0.0
    %2000 = vmatprep.mubr.f32.mxu0 %v674
    %2001 = vmatmul.mubr.f32.gmra.mrb[0].mxu0 %v63
    %v2002 = vpop.f32.mrb[0].mxu0
    %v2003 = vadd.f32 %v1933, %v2002
    %v2004 = vpop.f32.mrb[0].mxu0
    %2005 = vdwg.mxu0
    %v2006 = vtanh.pop %v2003
    %v2007 = vld [vmem:[%s3] sm:$0xff]
    %v2008 = vld [vmem:[%s3 + $0x8] sm:$0xff]
    %v2009 = vld [vmem:[%s3 + $0x10] sm:$0xff]
    %v2010 = vld [vmem:[%s3 + $0x18] sm:$0xff]
    %v2011 = vld [vmem:[%s4] sm:$0x1]
    %v2013 = vlaneseq
    %v2014 = vshrl.u32 %v2013, 7
    %v2015 = vsub.s32 0, %v2014
    %v2016 = vrot.slane %v2011, %v2015
    %vm2018 = vcmask 261120
    %v2020 = vsel %vm2018, %v2006, 0
    %2022 = vmatprep.subr.mxu0 0.0
    %2023 = vmatpush1.msra.mxu0 %v2007
    %2024 = vmatprep.subr.mxu0 0.0
    %2025 = vmatpush1.msra.mxu0 %v2008
    %2026 = vmatprep.subr.mxu0 0.0
    %2027 = vmatpush1.msra.mxu0 %v2009
    %2028 = vmatprep.subr.mxu0 0.0
    %2029 = vmatpush1.msra.mxu0 %v2010
    %2030 = vmatprep.subr.mxu0 0.0
    %2031 = vmatpush1.msra.mxu0 0.0
    %2032 = vmatprep.subr.mxu0 0.0
    %2033 = vmatpush1.msra.mxu0 0.0
    %2034 = vmatprep.subr.mxu0 0.0
    %2035 = vmatpush1.msra.mxu0 0.0
    %2036 = vmatprep.subr.mxu0 0.0
    %2037 = vmatpush1.msra.mxu0 0.0
    %2038 = vmatprep.subr.mxu0 0.0
    %2039 = vmatpush1.msra.mxu0 0.0
    %2040 = vmatprep.subr.mxu0 0.0
    %2041 = vmatpush1.msra.mxu0 0.0
    %2042 = vmatprep.subr.mxu0 0.0
    %2043 = vmatpush1.msra.mxu0 0.0
    %2044 = vmatprep.subr.mxu0 0.0
    %2045 = vmatpush1.msra.mxu0 0.0
    %2046 = vmatprep.subr.mxu0 0.0
    %2047 = vmatpush1.msra.mxu0 0.0
    %2048 = vmatprep.subr.mxu0 0.0
    %2049 = vmatpush1.msra.mxu0 0.0
    %2050 = vmatprep.subr.mxu0 0.0
    %2051 = vmatpush1.msra.mxu0 0.0
    %2052 = vmatprep.subr.mxu0 0.0
    %2053 = vmatpush1.msra.mxu0 0.0
    %2054 = vmatprep.subr.mxu0 0.0
    %2055 = vmatpush1.msra.mxu0 0.0
    %2056 = vmatprep.subr.mxu0 0.0
    %2057 = vmatpush1.msra.mxu0 0.0
    %2058 = vmatprep.subr.mxu0 0.0
    %2059 = vmatpush1.msra.mxu0 0.0
    %2060 = vmatprep.subr.mxu0 0.0
    %2061 = vmatpush1.msra.mxu0 0.0
    %2062 = vmatprep.subr.mxu0 0.0
    %2063 = vmatpush1.msra.mxu0 0.0
    %2064 = vmatprep.subr.mxu0 0.0
    %2065 = vmatpush1.msra.mxu0 0.0
    %2066 = vmatprep.subr.mxu0 0.0
    %2067 = vmatpush1.msra.mxu0 0.0
    %2068 = vmatprep.subr.mxu0 0.0
    %2069 = vmatpush1.msra.mxu0 0.0
    %2070 = vmatprep.subr.mxu0 0.0
    %2071 = vmatpush1.msra.mxu0 0.0
    %2072 = vmatprep.subr.mxu0 0.0
    %2073 = vmatpush1.msra.mxu0 0.0
    %2074 = vmatprep.subr.mxu0 0.0
    %2075 = vmatpush1.msra.mxu0 0.0
    %2076 = vmatprep.subr.mxu0 0.0
    %2077 = vmatpush1.msra.mxu0 0.0
    %2078 = vmatprep.subr.mxu0 0.0
    %2079 = vmatpush1.msra.mxu0 0.0
    %2080 = vmatprep.subr.mxu0 0.0
    %2081 = vmatpush1.msra.mxu0 0.0
    %2082 = vmatprep.subr.mxu0 0.0
    %2083 = vmatpush1.msra.mxu0 0.0
    %2084 = vmatprep.subr.mxu0 0.0
    %2085 = vmatpush1.msra.mxu0 0.0
    %2086 = vmatprep.mubr.f32.mxu0 0.0
    %2087 = vmatmul.mubr.f32.gmra.mrb[0].mxu0 %v2020
    %v2088 = vpop.f32.mrb[0].mxu0
    %v2089 = vadd.f32 %v2016, %v2088
    %v2090 = vpop.f32.mrb[0].mxu0
    %2091 = vdwg.mxu0
    %v2092 = vtanh.pop %v2089
    %v2093 = vld [vmem:[%s5] sm:$0xff]
    %v2094 = vld [vmem:[%s5 + $0x8] sm:$0xff]
    %v2095 = vld [vmem:[%s5 + $0x10] sm:$0xff]
    %v2096 = vld [vmem:[%s5 + $0x18] sm:$0xff]
    %v2097 = vld [vmem:[%s6] sm:$0x1]
    %v2099 = vlaneseq
    %v2100 = vshrl.u32 %v2099, 7
    %v2101 = vsub.s32 0, %v2100
    %v2102 = vrot.slane %v2097, %v2101
    %v2105 = vsel %vm2018, %v2092, 0
    %2107 = vmatprep.subr.mxu0 0.0
    %2108 = vmatpush1.msra.mxu0 %v2093
    %2109 = vmatprep.subr.mxu0 0.0
    %2110 = vmatpush1.msra.mxu0 %v2094
    %2111 = vmatprep.subr.mxu0 0.0
    %2112 = vmatpush1.msra.mxu0 %v2095
    %2113 = vmatprep.subr.mxu0 0.0
    %2114 = vmatpush1.msra.mxu0 %v2096
    %2115 = vmatprep.subr.mxu0 0.0
    %2116 = vmatpush1.msra.mxu0 0.0
    %2117 = vmatprep.subr.mxu0 0.0
    %2118 = vmatpush1.msra.mxu0 0.0
    %2119 = vmatprep.subr.mxu0 0.0
    %2120 = vmatpush1.msra.mxu0 0.0
    %2121 = vmatprep.subr.mxu0 0.0
    %2122 = vmatpush1.msra.mxu0 0.0
    %2123 = vmatprep.subr.mxu0 0.0
    %2124 = vmatpush1.msra.mxu0 0.0
    %2125 = vmatprep.subr.mxu0 0.0
    %2126 = vmatpush1.msra.mxu0 0.0
    %2127 = vmatprep.subr.mxu0 0.0
    %2128 = vmatpush1.msra.mxu0 0.0
    %2129 = vmatprep.subr.mxu0 0.0
    %2130 = vmatpush1.msra.mxu0 0.0
    %2131 = vmatprep.subr.mxu0 0.0
    %2132 = vmatpush1.msra.mxu0 0.0
    %2133 = vmatprep.subr.mxu0 0.0
    %2134 = vmatpush1.msra.mxu0 0.0
    %2135 = vmatprep.subr.mxu0 0.0
    %2136 = vmatpush1.msra.mxu0 0.0
    %2137 = vmatprep.subr.mxu0 0.0
    %2138 = vmatpush1.msra.mxu0 0.0
    %2139 = vmatprep.subr.mxu0 0.0
    %2140 = vmatpush1.msra.mxu0 0.0
    %2141 = vmatprep.subr.mxu0 0.0
    %2142 = vmatpush1.msra.mxu0 0.0
    %2143 = vmatprep.subr.mxu0 0.0
    %2144 = vmatpush1.msra.mxu0 0.0
    %2145 = vmatprep.subr.mxu0 0.0
    %2146 = vmatpush1.msra.mxu0 0.0
    %2147 = vmatprep.subr.mxu0 0.0
    %2148 = vmatpush1.msra.mxu0 0.0
    %2149 = vmatprep.subr.mxu0 0.0
    %2150 = vmatpush1.msra.mxu0 0.0
    %2151 = vmatprep.subr.mxu0 0.0
    %2152 = vmatpush1.msra.mxu0 0.0
    %2153 = vmatprep.subr.mxu0 0.0
    %2154 = vmatpush1.msra.mxu0 0.0
    %2155 = vmatprep.subr.mxu0 0.0
    %2156 = vmatpush1.msra.mxu0 0.0
    %2157 = vmatprep.subr.mxu0 0.0
    %2158 = vmatpush1.msra.mxu0 0.0
    %2159 = vmatprep.subr.mxu0 0.0
    %2160 = vmatpush1.msra.mxu0 0.0
    %2161 = vmatprep.subr.mxu0 0.0
    %2162 = vmatpush1.msra.mxu0 0.0
    %2163 = vmatprep.subr.mxu0 0.0
    %2164 = vmatpush1.msra.mxu0 0.0
    %2165 = vmatprep.subr.mxu0 0.0
    %2166 = vmatpush1.msra.mxu0 0.0
    %2167 = vmatprep.subr.mxu0 0.0
    %2168 = vmatpush1.msra.mxu0 0.0
    %2169 = vmatprep.subr.mxu0 0.0
    %2170 = vmatpush1.msra.mxu0 0.0
    %2171 = vmatprep.mubr.f32.mxu0 0.0
    %2172 = vmatmul.mubr.f32.gmra.mrb[0].mxu0 %v2105
    %v2173 = vpop.f32.mrb[0].mxu0
    %v2174 = vadd.f32 %v2102, %v2173
    %v2175 = vpop.f32.mrb[0].mxu0
    %2176 = vdwg.mxu0
    %vm2177 = vcmask 80896
    %v2178 = vsel %vm2177, %v2174, -inf
    %2179 = vmax.xlane.f32.xlu0 %v2178
    %v2180 = vpop.xlane.xlu0 %2179
    %v2181 = vsub.f32 %v2174, %v2180
    %v2182 = vmul.f32 %v2181, 1.442695
    %v2183 = vpow.pop %v2182
    %v2184 = vsel %vm2177, %v2183, 0.0
    %2185 = vadd.xlane.f32.xlu0 %v2184
    %v2186 = vpop.xlane.xlu0 %2185
    %v2187 = vlog2.pop %v2186
    %v2188 = vmul.f32 %v2187, 0.6931472
    %v2189 = vsub.f32 %v2181, %v2188
    %2190 = vst.msk [vmem:[#allocation2] sm:$0xff] %vm2177, %v2189
    // Predicated region
    $region30: #{tpu_custom_call.1} parent=1 // pred_check
      _
    $region31: #{tpu_custom_call.1} parent=1 // pred_check_branch
      %2192 = sbr.rel (0) target = $region33
    $region32: #{tpu_custom_call.1} parent=1 // pred_region
      %s2194 = ssub.s32 128, 128
      %2195 = vsyncadd [#allocation3], %s2194
      %s2197 = sshll.u32 [#allocation2], 4
      %s2198 = int_to_ptr.vmem [resolvable:$true] %s2197
      %2200 = dma.vmem_to_hbm [thread:$0]  %s2198, 128, %s7, [#allocation3]
    $region33: #{tpu_custom_call.1} parent=1 // pred_fallthru
      _
    // Predicated region
    $region34: #{tpu_custom_call.1} parent=1 // pred_check
      _
    $region35: #{tpu_custom_call.1} parent=1 // pred_check_branch
      %2202 = sbr.rel (0) target = $region37
    $region36: #{tpu_custom_call.1} parent=1 // pred_region
      %2203 = dma.done [#allocation3], 128
    $region37: #{tpu_custom_call.1} parent=1 // pred_fallthru
      _
    %2204 = vsyncpa [#allocation3], 1

</llo_original>
